<compile_context>
chip_gen: v7x
topology: tpu7x:2x2x1
jax: 0.10.0
libtpu: 0.0.40
codegen_flags: <defaults>
</compile_context>

<pallas_src>
import functools

import jax
import jax.numpy as jnp
from jax.experimental import pallas as pl
from jax.experimental.pallas import tpu as pltpu

EPS = 1e-5      # PyTorch InstanceNorm2d default eps
SUBLANE = 8     # f32 sublane granule


def _conv3x3_in_relu(x, w_ref, gamma, beta, mask_ref, W):
    """One (Conv3x3 pad=1, no bias) => InstanceNorm2d(affine) => ReLU stage.

    x       : (Cin, HW) f32 activation (HW = H*W flattened, lane axis).
    w_ref   : (9, Cout, Cin) bf16 weight ref, tap-major (tap = dh*3 + dw).
    gamma   : (Cout, 1) f32, beta: (Cout, 1) f32.
    mask_ref: (9, HW) f32 per-tap border-validity mask (handles the conv padding=1 border).
    Returns the post-ReLU activation (Cout, HW) f32.
    """
    _, HW = x.shape
    Cout = w_ref.shape[1]

    acc = jnp.zeros((Cout, HW), jnp.float32)
    for dh in range(3):
        for dw in range(3):
            tap = dh * 3 + dw
            s = (dh - 1) * W + (dw - 1)          # flat pixel offset of this tap
            if s == 0:
                patch = x                        # center tap: no shift, mask is all ones
            else:
                # patch[:, p] = x[:, (p + s) % HW]  (== jnp.roll(x, -s) along the lane axis);
                # positions whose source lies outside the image are zeroed by the mask.
                patch = pltpu.roll(x, (-s) % HW, 1)
                patch = patch * mask_ref[tap:tap + 1, :]     # f32 multiply (v5e-friendly)
            acc = acc + jnp.dot(w_ref[tap], patch.astype(jnp.bfloat16),
                                preferred_element_type=jnp.float32)

    # InstanceNorm2d: biased variance over the spatial axis, per channel, one pass in f32.
    inv_hw = 1.0 / HW
    mean = jnp.sum(acc, axis=1, keepdims=True) * inv_hw                 # (Cout, 1)
    ex2 = jnp.sum(acc * acc, axis=1, keepdims=True) * inv_hw            # (Cout, 1)
    var = jnp.maximum(ex2 - mean * mean, 0.0)
    y = (acc - mean) * jax.lax.rsqrt(var + EPS)
    y = y * gamma + beta                                                # affine
    return jnp.maximum(y, 0.0)                                          # ReLU


def double_conv_kernel(x_ref, mask_ref, w1_ref, g1_ref, b1_ref,
                       w2_ref, g2_ref, b2_ref, out_ref, *, W):
    """One batch element per grid step.

    x_ref   : (1, Cin, HW)       mask_ref: (9, HW)
    w*_ref  : (9, Cout, Cin) bf16 tap-major conv weights
    g*/b*   : (C, 1) f32 InstanceNorm affine params
    out_ref : (1, Cout, HW)
    """
    x = x_ref[0].astype(jnp.float32)                                    # (Cin, HW)
    y1 = _conv3x3_in_relu(x, w1_ref, g1_ref[...], b1_ref[...], mask_ref, W)
    y2 = _conv3x3_in_relu(y1, w2_ref, g2_ref[...], b2_ref[...], mask_ref, W)
    out_ref[0] = y2.astype(out_ref.dtype)


def _pad_axis(a, axis, target):
    pad = [(0, 0)] * a.ndim
    pad[axis] = (0, target - a.shape[axis])
    return jnp.pad(a, pad)


def double_conv_forward(x, params):
    """x: (N, Cin, H, W) NCHW.  params = (w1 HWIO, g1, b1, w2 HWIO, g2, b2).

    Returns (N, Cout, H, W) NCHW, matching the PyTorch DoubleConv forward.
    """
    w1, g1, b1, w2, g2, b2 = params
    N, Cin, H, W = x.shape
    Cmid = w1.shape[-1]
    Cout = w2.shape[-1]
    HW = H * W

    rup = lambda c: ((c + SUBLANE - 1) // SUBLANE) * SUBLANE
    Cin_p, Cmid_p, Cout_p = rup(Cin), rup(Cmid), rup(Cout)

    # Free reshape + cheap zero channel-pad; no transpose / spatial padding over HBM.
    x_flat = _pad_axis(x.reshape(N, Cin, HW), 1, Cin_p)

    def prep_w(w, ci_p, co_p):
        kh, kw, ci, co = w.shape
        wt = jnp.transpose(w, (0, 1, 3, 2)).reshape(kh * kw, co, ci)    # (9, Cout, Cin)
        wt = jnp.pad(wt, ((0, 0), (0, co_p - co), (0, ci_p - ci)))
        return wt.astype(jnp.bfloat16)                                  # bf16 MXU operand

    def prep_affine(v, c_p):
        return jnp.pad(v.reshape(-1, 1).astype(jnp.float32), ((0, c_p - v.shape[0]), (0, 0)))

    w1m = prep_w(w1, Cin_p, Cmid_p)
    w2m = prep_w(w2, Cmid_p, Cout_p)
    g1c, b1c = prep_affine(g1, Cmid_p), prep_affine(b1, Cmid_p)
    g2c, b2c = prep_affine(g2, Cout_p), prep_affine(b2, Cout_p)

    # Per-tap border validity masks (shape (9, HW)); generated together with the kernel's W so
    # the mod-HW shift and the mask always agree.
    hh = jnp.arange(H).reshape(H, 1)
    ww = jnp.arange(W).reshape(1, W)
    mask_rows = []
    for dh in range(3):
        for dw in range(3):
            valid = ((hh + dh - 1 >= 0) & (hh + dh - 1 < H) &
                     (ww + dw - 1 >= 0) & (ww + dw - 1 < W))
            mask_rows.append(valid.reshape(HW))
    mask = jnp.stack(mask_rows, axis=0).astype(jnp.float32)             # (9, HW)

    kernel = functools.partial(double_conv_kernel, W=W)

    out_flat = pl.pallas_call(
        kernel,
        out_shape=jax.ShapeDtypeStruct((N, Cout_p, HW), x.dtype),
        grid_spec=pltpu.PrefetchScalarGridSpec(
            num_scalar_prefetch=0,
            grid=(N,),
            in_specs=[
                pl.BlockSpec((1, Cin_p, HW), lambda n: (n, 0, 0)),
                pl.BlockSpec((9, HW), lambda n: (0, 0)),
                pl.BlockSpec((9, Cmid_p, Cin_p), lambda n: (0, 0, 0)),
                pl.BlockSpec((Cmid_p, 1), lambda n: (0, 0)),
                pl.BlockSpec((Cmid_p, 1), lambda n: (0, 0)),
                pl.BlockSpec((9, Cout_p, Cmid_p), lambda n: (0, 0, 0)),
                pl.BlockSpec((Cout_p, 1), lambda n: (0, 0)),
                pl.BlockSpec((Cout_p, 1), lambda n: (0, 0)),
            ],
            out_specs=pl.BlockSpec((1, Cout_p, HW), lambda n: (n, 0, 0)),
        ),
        compiler_params=pltpu.CompilerParams(
            dimension_semantics=("parallel",),        # batch elements are independent
            vmem_limit_bytes=32 * 1024 * 1024),       # safe on v5e/v6e/v7x; prod shapes: see TODO
    )(x_flat, mask, w1m, g1c, b1c, w2m, g2c, b2c)

    return out_flat[:, :Cout, :].reshape(N, Cout, H, W)


def double_conv_reference(x, params, compute_dtype=None):
    """Pure-JAX reference of the PyTorch DoubleConv forward.

    If compute_dtype is set (e.g. bf16), the conv inputs are rounded to that dtype before an
    f32-accumulated convolution, mirroring the kernel's bf16 MXU inputs.
    """
    w1, g1, b1, w2, g2, b2 = params

    def conv_in_relu(xa, w, g, b):
        if compute_dtype is not None:
            xa = xa.astype(compute_dtype)
            w = w.astype(compute_dtype)
        y = jax.lax.conv_general_dilated(
            xa, w, window_strides=(1, 1), padding=((1, 1), (1, 1)),
            dimension_numbers=('NCHW', 'HWIO', 'NCHW'),
            preferred_element_type=jnp.float32)
        mean = jnp.mean(y, axis=(2, 3), keepdims=True)
        var = jnp.mean((y - mean) ** 2, axis=(2, 3), keepdims=True)
        y = (y - mean) * jax.lax.rsqrt(var + EPS)
        y = y * g.reshape(1, -1, 1, 1) + b.reshape(1, -1, 1, 1)
        return jnp.maximum(y, 0.0)

    return conv_in_relu(conv_in_relu(x, w1, g1, b1), w2, g2, b2)


if __name__ == "__main__":
    # Small shapes consistent with the module: batch=2, in/out channels=4, spatial 16x16.
    N, Cin, Cout = 2, 4, 4        # mid_channels defaults to out_channels in DoubleConv
    H, W = 16, 16

    key = jax.random.PRNGKey(0)
    kx, kw1, kw2, kg1, kb1, kg2, kb2 = jax.random.split(key, 7)

    x = jax.random.normal(kx, (N, Cin, H, W), jnp.float32)

    # Synthetic parameters (conv weights in HWIO; no conv bias, matching bias=False).
    w1 = jax.random.normal(kw1, (3, 3, Cin, Cout), jnp.float32) * 0.2
    w2 = jax.random.normal(kw2, (3, 3, Cout, Cout), jnp.float32) * 0.2
    g1 = 1.0 + 0.1 * jax.random.normal(kg1, (Cout,), jnp.float32)
    b1 = 0.1 * jax.random.normal(kb1, (Cout,), jnp.float32)
    g2 = 1.0 + 0.1 * jax.random.normal(kg2, (Cout,), jnp.float32)
    b2 = 0.1 * jax.random.normal(kb2, (Cout,), jnp.float32)
    params = (w1, g1, b1, w2, g2, b2)

    out = jax.block_until_ready(double_conv_forward(x, params))
    assert out.shape == (N, Cout, H, W), out.shape

    # Check 1 (kernel logic): reference with the same bf16 rounding of the MXU inputs.
    ref_bf16 = jax.block_until_ready(
        double_conv_reference(x, params, compute_dtype=jnp.bfloat16))
    err_b = float(jnp.max(jnp.abs(out - ref_bf16)))
    assert jnp.allclose(out, ref_bf16, atol=2e-2, rtol=2e-2), err_b

    # Check 2 (module semantics): exact f32 reference; residual is bf16 MXU quantization noise.
    ref_f32 = jax.block_until_ready(double_conv_reference(x, params))
    err_f = float(jnp.max(jnp.abs(out - ref_f32)))
    assert jnp.allclose(out, ref_f32, atol=5e-2, rtol=5e-2), err_f

    print("KERNEL_OK")
</pallas_src>

<mosaic_0001>
module attributes {stable_mosaic.version = 11 : i64} {
  func.func @double_conv_kernel(%arg0: i32, %arg1: memref<1x8x256xf32, #tpu.memory_space<vmem>>, %arg2: memref<9x256xf32, #tpu.memory_space<vmem>>, %arg3: memref<9x8x8xbf16, #tpu.memory_space<vmem>>, %arg4: memref<8x1xf32, #tpu.memory_space<vmem>>, %arg5: memref<8x1xf32, #tpu.memory_space<vmem>>, %arg6: memref<9x8x8xbf16, #tpu.memory_space<vmem>>, %arg7: memref<8x1xf32, #tpu.memory_space<vmem>>, %arg8: memref<8x1xf32, #tpu.memory_space<vmem>>, %arg9: memref<1x8x256xf32, #tpu.memory_space<vmem>>) attributes {dimension_semantics = [#tpu.dimension_semantics<parallel>], iteration_bounds = array<i64: 2>, scalar_prefetch = 0 : i64, scratch_operands = 0 : i64, tpu.core_type = #tpu.core_type<tc>, window_params = [{transform_indices = @transform_0, window_bounds = array<i64: 1, 8, 256>}, {pipeline_mode = #tpu.pipeline_mode<synchronous>, transform_indices = @transform_1, window_bounds = array<i64: 9, 256>}, {pipeline_mode = #tpu.pipeline_mode<synchronous>, transform_indices = @transform_2, window_bounds = array<i64: 9, 8, 8>}, {pipeline_mode = #tpu.pipeline_mode<synchronous>, transform_indices = @transform_3, window_bounds = array<i64: 8, 1>}, {pipeline_mode = #tpu.pipeline_mode<synchronous>, transform_indices = @transform_4, window_bounds = array<i64: 8, 1>}, {pipeline_mode = #tpu.pipeline_mode<synchronous>, transform_indices = @transform_5, window_bounds = array<i64: 9, 8, 8>}, {pipeline_mode = #tpu.pipeline_mode<synchronous>, transform_indices = @transform_6, window_bounds = array<i64: 8, 1>}, {pipeline_mode = #tpu.pipeline_mode<synchronous>, transform_indices = @transform_7, window_bounds = array<i64: 8, 1>}, {transform_indices = @transform_8, window_bounds = array<i64: 1, 8, 256>}]} {
    %c0 = arith.constant 0 : index
    %c0_0 = arith.constant 0 : index
    %c0_1 = arith.constant 0 : index
    %0 = vector.load %arg1[%c0, %c0_0, %c0_1] : memref<1x8x256xf32, #tpu.memory_space<vmem>>, vector<1x8x256xf32>
    %1 = vector.shape_cast %0 : vector<1x8x256xf32> to vector<8x256xf32>
    %c0_2 = arith.constant 0 : index
    %c0_3 = arith.constant 0 : index
    %2 = vector.load %arg4[%c0_2, %c0_3] : memref<8x1xf32, #tpu.memory_space<vmem>>, vector<8x1xf32>
    %c0_4 = arith.constant 0 : index
    %c0_5 = arith.constant 0 : index
    %3 = vector.load %arg5[%c0_4, %c0_5] : memref<8x1xf32, #tpu.memory_space<vmem>>, vector<8x1xf32>
    %cst = arith.constant 0.000000e+00 : f32
    %4 = vector.broadcast %cst : f32 to vector<8x256xf32>
    %c17_i32 = arith.constant 17 : i32
    %5 = tpu.dynamic_rotate %1 by %c17_i32 dim 1 : vector<8x256xf32>, i32 -> vector<8x256xf32>
    %c0_6 = arith.constant 0 : index
    %c0_7 = arith.constant 0 : index
    %6 = vector.load %arg2[%c0_6, %c0_7] : memref<9x256xf32, #tpu.memory_space<vmem>>, vector<1x256xf32>
    %7 = vector.broadcast %6 : vector<1x256xf32> to vector<8x256xf32>
    %8 = arith.mulf %5, %7 : vector<8x256xf32>
    %c0_8 = arith.constant 0 : index
    %c0_9 = arith.constant 0 : index
    %c0_10 = arith.constant 0 : index
    %9 = vector.load %arg3[%c0_8, %c0_9, %c0_10] : memref<9x8x8xbf16, #tpu.memory_space<vmem>>, vector<1x8x8xbf16>
    %10 = vector.shape_cast %9 : vector<1x8x8xbf16> to vector<8x8xbf16>
    %11 = arith.truncf %8 : vector<8x256xf32> to vector<8x256xbf16>
    %cst_11 = arith.constant dense<0.000000e+00> : vector<8x256xf32>
    %12 = tpu.matmul %10, %11, %cst_11 {dimension_numbers = #tpu.dot_dimension_numbers<[1], [0], [0], [1], [0, 0, 1, 1], [], []>} : vector<8x8xbf16>, vector<8x256xbf16>, vector<8x256xf32> -> vector<8x256xf32>
    %13 = arith.addf %4, %12 : vector<8x256xf32>
    %c16_i32 = arith.constant 16 : i32
    %14 = tpu.dynamic_rotate %1 by %c16_i32 dim 1 : vector<8x256xf32>, i32 -> vector<8x256xf32>
    %c1 = arith.constant 1 : index
    %c0_12 = arith.constant 0 : index
    %15 = vector.load %arg2[%c1, %c0_12] : memref<9x256xf32, #tpu.memory_space<vmem>>, vector<1x256xf32>
    %16 = vector.broadcast %15 : vector<1x256xf32> to vector<8x256xf32>
    %17 = arith.mulf %14, %16 : vector<8x256xf32>
    %c1_13 = arith.constant 1 : index
    %c0_14 = arith.constant 0 : index
    %c0_15 = arith.constant 0 : index
    %18 = vector.load %arg3[%c1_13, %c0_14, %c0_15] : memref<9x8x8xbf16, #tpu.memory_space<vmem>>, vector<1x8x8xbf16>
    %19 = vector.shape_cast %18 : vector<1x8x8xbf16> to vector<8x8xbf16>
    %20 = arith.truncf %17 : vector<8x256xf32> to vector<8x256xbf16>
    %cst_16 = arith.constant dense<0.000000e+00> : vector<8x256xf32>
    %21 = tpu.matmul %19, %20, %cst_16 {dimension_numbers = #tpu.dot_dimension_numbers<[1], [0], [0], [1], [0, 0, 1, 1], [], []>} : vector<8x8xbf16>, vector<8x256xbf16>, vector<8x256xf32> -> vector<8x256xf32>
    %22 = arith.addf %13, %21 : vector<8x256xf32>
    %c15_i32 = arith.constant 15 : i32
    %23 = tpu.dynamic_rotate %1 by %c15_i32 dim 1 : vector<8x256xf32>, i32 -> vector<8x256xf32>
    %c2 = arith.constant 2 : index
    %c0_17 = arith.constant 0 : index
    %24 = vector.load %arg2[%c2, %c0_17] : memref<9x256xf32, #tpu.memory_space<vmem>>, vector<1x256xf32>
    %25 = vector.broadcast %24 : vector<1x256xf32> to vector<8x256xf32>
    %26 = arith.mulf %23, %25 : vector<8x256xf32>
    %c2_18 = arith.constant 2 : index
    %c0_19 = arith.constant 0 : index
    %c0_20 = arith.constant 0 : index
    %27 = vector.load %arg3[%c2_18, %c0_19, %c0_20] : memref<9x8x8xbf16, #tpu.memory_space<vmem>>, vector<1x8x8xbf16>
    %28 = vector.shape_cast %27 : vector<1x8x8xbf16> to vector<8x8xbf16>
    %29 = arith.truncf %26 : vector<8x256xf32> to vector<8x256xbf16>
    %cst_21 = arith.constant dense<0.000000e+00> : vector<8x256xf32>
    %30 = tpu.matmul %28, %29, %cst_21 {dimension_numbers = #tpu.dot_dimension_numbers<[1], [0], [0], [1], [0, 0, 1, 1], [], []>} : vector<8x8xbf16>, vector<8x256xbf16>, vector<8x256xf32> -> vector<8x256xf32>
    %31 = arith.addf %22, %30 : vector<8x256xf32>
    %c1_i32 = arith.constant 1 : i32
    %32 = tpu.dynamic_rotate %1 by %c1_i32 dim 1 : vector<8x256xf32>, i32 -> vector<8x256xf32>
    %c3 = arith.constant 3 : index
    %c0_22 = arith.constant 0 : index
    %33 = vector.load %arg2[%c3, %c0_22] : memref<9x256xf32, #tpu.memory_space<vmem>>, vector<1x256xf32>
    %34 = vector.broadcast %33 : vector<1x256xf32> to vector<8x256xf32>
    %35 = arith.mulf %32, %34 : vector<8x256xf32>
    %c3_23 = arith.constant 3 : index
    %c0_24 = arith.constant 0 : index
    %c0_25 = arith.constant 0 : index
    %36 = vector.load %arg3[%c3_23, %c0_24, %c0_25] : memref<9x8x8xbf16, #tpu.memory_space<vmem>>, vector<1x8x8xbf16>
    %37 = vector.shape_cast %36 : vector<1x8x8xbf16> to vector<8x8xbf16>
    %38 = arith.truncf %35 : vector<8x256xf32> to vector<8x256xbf16>
    %cst_26 = arith.constant dense<0.000000e+00> : vector<8x256xf32>
    %39 = tpu.matmul %37, %38, %cst_26 {dimension_numbers = #tpu.dot_dimension_numbers<[1], [0], [0], [1], [0, 0, 1, 1], [], []>} : vector<8x8xbf16>, vector<8x256xbf16>, vector<8x256xf32> -> vector<8x256xf32>
    %40 = arith.addf %31, %39 : vector<8x256xf32>
    %c4 = arith.constant 4 : index
    %c0_27 = arith.constant 0 : index
    %c0_28 = arith.constant 0 : index
    %41 = vector.load %arg3[%c4, %c0_27, %c0_28] : memref<9x8x8xbf16, #tpu.memory_space<vmem>>, vector<1x8x8xbf16>
    %42 = vector.shape_cast %41 : vector<1x8x8xbf16> to vector<8x8xbf16>
    %43 = arith.truncf %1 : vector<8x256xf32> to vector<8x256xbf16>
    %cst_29 = arith.constant dense<0.000000e+00> : vector<8x256xf32>
    %44 = tpu.matmul %42, %43, %cst_29 {dimension_numbers = #tpu.dot_dimension_numbers<[1], [0], [0], [1], [0, 0, 1, 1], [], []>} : vector<8x8xbf16>, vector<8x256xbf16>, vector<8x256xf32> -> vector<8x256xf32>
    %45 = arith.addf %40, %44 : vector<8x256xf32>
    %c255_i32 = arith.constant 255 : i32
    %46 = tpu.dynamic_rotate %1 by %c255_i32 dim 1 : vector<8x256xf32>, i32 -> vector<8x256xf32>
    %c5 = arith.constant 5 : index
    %c0_30 = arith.constant 0 : index
    %47 = vector.load %arg2[%c5, %c0_30] : memref<9x256xf32, #tpu.memory_space<vmem>>, vector<1x256xf32>
    %48 = vector.broadcast %47 : vector<1x256xf32> to vector<8x256xf32>
    %49 = arith.mulf %46, %48 : vector<8x256xf32>
    %c5_31 = arith.constant 5 : index
    %c0_32 = arith.constant 0 : index
    %c0_33 = arith.constant 0 : index
    %50 = vector.load %arg3[%c5_31, %c0_32, %c0_33] : memref<9x8x8xbf16, #tpu.memory_space<vmem>>, vector<1x8x8xbf16>
    %51 = vector.shape_cast %50 : vector<1x8x8xbf16> to vector<8x8xbf16>
    %52 = arith.truncf %49 : vector<8x256xf32> to vector<8x256xbf16>
    %cst_34 = arith.constant dense<0.000000e+00> : vector<8x256xf32>
    %53 = tpu.matmul %51, %52, %cst_34 {dimension_numbers = #tpu.dot_dimension_numbers<[1], [0], [0], [1], [0, 0, 1, 1], [], []>} : vector<8x8xbf16>, vector<8x256xbf16>, vector<8x256xf32> -> vector<8x256xf32>
    %54 = arith.addf %45, %53 : vector<8x256xf32>
    %c241_i32 = arith.constant 241 : i32
    %55 = tpu.dynamic_rotate %1 by %c241_i32 dim 1 : vector<8x256xf32>, i32 -> vector<8x256xf32>
    %c6 = arith.constant 6 : index
    %c0_35 = arith.constant 0 : index
    %56 = vector.load %arg2[%c6, %c0_35] : memref<9x256xf32, #tpu.memory_space<vmem>>, vector<1x256xf32>
    %57 = vector.broadcast %56 : vector<1x256xf32> to vector<8x256xf32>
    %58 = arith.mulf %55, %57 : vector<8x256xf32>
    %c6_36 = arith.constant 6 : index
    %c0_37 = arith.constant 0 : index
    %c0_38 = arith.constant 0 : index
    %59 = vector.load %arg3[%c6_36, %c0_37, %c0_38] : memref<9x8x8xbf16, #tpu.memory_space<vmem>>, vector<1x8x8xbf16>
    %60 = vector.shape_cast %59 : vector<1x8x8xbf16> to vector<8x8xbf16>
    %61 = arith.truncf %58 : vector<8x256xf32> to vector<8x256xbf16>
    %cst_39 = arith.constant dense<0.000000e+00> : vector<8x256xf32>
    %62 = tpu.matmul %60, %61, %cst_39 {dimension_numbers = #tpu.dot_dimension_numbers<[1], [0], [0], [1], [0, 0, 1, 1], [], []>} : vector<8x8xbf16>, vector<8x256xbf16>, vector<8x256xf32> -> vector<8x256xf32>
    %63 = arith.addf %54, %62 : vector<8x256xf32>
    %c240_i32 = arith.constant 240 : i32
    %64 = tpu.dynamic_rotate %1 by %c240_i32 dim 1 : vector<8x256xf32>, i32 -> vector<8x256xf32>
    %c7 = arith.constant 7 : index
    %c0_40 = arith.constant 0 : index
    %65 = vector.load %arg2[%c7, %c0_40] : memref<9x256xf32, #tpu.memory_space<vmem>>, vector<1x256xf32>
    %66 = vector.broadcast %65 : vector<1x256xf32> to vector<8x256xf32>
    %67 = arith.mulf %64, %66 : vector<8x256xf32>
    %c7_41 = arith.constant 7 : index
    %c0_42 = arith.constant 0 : index
    %c0_43 = arith.constant 0 : index
    %68 = vector.load %arg3[%c7_41, %c0_42, %c0_43] : memref<9x8x8xbf16, #tpu.memory_space<vmem>>, vector<1x8x8xbf16>
    %69 = vector.shape_cast %68 : vector<1x8x8xbf16> to vector<8x8xbf16>
    %70 = arith.truncf %67 : vector<8x256xf32> to vector<8x256xbf16>
    %cst_44 = arith.constant dense<0.000000e+00> : vector<8x256xf32>
    %71 = tpu.matmul %69, %70, %cst_44 {dimension_numbers = #tpu.dot_dimension_numbers<[1], [0], [0], [1], [0, 0, 1, 1], [], []>} : vector<8x8xbf16>, vector<8x256xbf16>, vector<8x256xf32> -> vector<8x256xf32>
    %72 = arith.addf %63, %71 : vector<8x256xf32>
    %c239_i32 = arith.constant 239 : i32
    %73 = tpu.dynamic_rotate %1 by %c239_i32 dim 1 : vector<8x256xf32>, i32 -> vector<8x256xf32>
    %c8 = arith.constant 8 : index
    %c0_45 = arith.constant 0 : index
    %74 = vector.load %arg2[%c8, %c0_45] : memref<9x256xf32, #tpu.memory_space<vmem>>, vector<1x256xf32>
    %75 = vector.broadcast %74 : vector<1x256xf32> to vector<8x256xf32>
    %76 = arith.mulf %73, %75 : vector<8x256xf32>
    %c8_46 = arith.constant 8 : index
    %c0_47 = arith.constant 0 : index
    %c0_48 = arith.constant 0 : index
    %77 = vector.load %arg3[%c8_46, %c0_47, %c0_48] : memref<9x8x8xbf16, #tpu.memory_space<vmem>>, vector<1x8x8xbf16>
    %78 = vector.shape_cast %77 : vector<1x8x8xbf16> to vector<8x8xbf16>
    %79 = arith.truncf %76 : vector<8x256xf32> to vector<8x256xbf16>
    %cst_49 = arith.constant dense<0.000000e+00> : vector<8x256xf32>
    %80 = tpu.matmul %78, %79, %cst_49 {dimension_numbers = #tpu.dot_dimension_numbers<[1], [0], [0], [1], [0, 0, 1, 1], [], []>} : vector<8x8xbf16>, vector<8x256xbf16>, vector<8x256xf32> -> vector<8x256xf32>
    %81 = arith.addf %72, %80 : vector<8x256xf32>
    %cst_50 = arith.constant dense<0.000000e+00> : vector<8xf32>
    %82 = vector.multi_reduction <add>, %81, %cst_50 [1] : vector<8x256xf32> to vector<8xf32>
    %83 = vector.shape_cast %82 : vector<8xf32> to vector<8x1xf32>
    %cst_51 = arith.constant 3.906250e-03 : f32
    %84 = vector.broadcast %cst_51 : f32 to vector<8x1xf32>
    %85 = arith.mulf %83, %84 : vector<8x1xf32>
    %86 = arith.mulf %81, %81 : vector<8x256xf32>
    %cst_52 = arith.constant dense<0.000000e+00> : vector<8xf32>
    %87 = vector.multi_reduction <add>, %86, %cst_52 [1] : vector<8x256xf32> to vector<8xf32>
    %88 = vector.shape_cast %87 : vector<8xf32> to vector<8x1xf32>
    %cst_53 = arith.constant 3.906250e-03 : f32
    %89 = vector.broadcast %cst_53 : f32 to vector<8x1xf32>
    %90 = arith.mulf %88, %89 : vector<8x1xf32>
    %91 = arith.mulf %85, %85 : vector<8x1xf32>
    %92 = arith.subf %90, %91 : vector<8x1xf32>
    %cst_54 = arith.constant 0.000000e+00 : f32
    %93 = vector.broadcast %cst_54 : f32 to vector<8x1xf32>
    %94 = arith.maximumf %92, %93 : vector<8x1xf32>
    %95 = vector.broadcast %85 : vector<8x1xf32> to vector<8x256xf32>
    %96 = arith.subf %81, %95 : vector<8x256xf32>
    %cst_55 = arith.constant 9.99999974E-6 : f32
    %97 = vector.broadcast %cst_55 : f32 to vector<8x1xf32>
    %98 = arith.addf %94, %97 : vector<8x1xf32>
    %99 = math.rsqrt %98 : vector<8x1xf32>
    %100 = vector.broadcast %99 : vector<8x1xf32> to vector<8x256xf32>
    %101 = arith.mulf %96, %100 : vector<8x256xf32>
    %102 = vector.broadcast %2 : vector<8x1xf32> to vector<8x256xf32>
    %103 = arith.mulf %101, %102 : vector<8x256xf32>
    %104 = vector.broadcast %3 : vector<8x1xf32> to vector<8x256xf32>
    %105 = arith.addf %103, %104 : vector<8x256xf32>
    %cst_56 = arith.constant 0.000000e+00 : f32
    %106 = vector.broadcast %cst_56 : f32 to vector<8x256xf32>
    %107 = arith.maximumf %105, %106 : vector<8x256xf32>
    %c0_57 = arith.constant 0 : index
    %c0_58 = arith.constant 0 : index
    %108 = vector.load %arg7[%c0_57, %c0_58] : memref<8x1xf32, #tpu.memory_space<vmem>>, vector<8x1xf32>
    %c0_59 = arith.constant 0 : index
    %c0_60 = arith.constant 0 : index
    %109 = vector.load %arg8[%c0_59, %c0_60] : memref<8x1xf32, #tpu.memory_space<vmem>>, vector<8x1xf32>
    %cst_61 = arith.constant 0.000000e+00 : f32
    %110 = vector.broadcast %cst_61 : f32 to vector<8x256xf32>
    %c17_i32_62 = arith.constant 17 : i32
    %111 = tpu.dynamic_rotate %107 by %c17_i32_62 dim 1 : vector<8x256xf32>, i32 -> vector<8x256xf32>
    %c0_63 = arith.constant 0 : index
    %c0_64 = arith.constant 0 : index
    %112 = vector.load %arg2[%c0_63, %c0_64] : memref<9x256xf32, #tpu.memory_space<vmem>>, vector<1x256xf32>
    %113 = vector.broadcast %112 : vector<1x256xf32> to vector<8x256xf32>
    %114 = arith.mulf %111, %113 : vector<8x256xf32>
    %c0_65 = arith.constant 0 : index
    %c0_66 = arith.constant 0 : index
    %c0_67 = arith.constant 0 : index
    %115 = vector.load %arg6[%c0_65, %c0_66, %c0_67] : memref<9x8x8xbf16, #tpu.memory_space<vmem>>, vector<1x8x8xbf16>
    %116 = vector.shape_cast %115 : vector<1x8x8xbf16> to vector<8x8xbf16>
    %117 = arith.truncf %114 : vector<8x256xf32> to vector<8x256xbf16>
    %cst_68 = arith.constant dense<0.000000e+00> : vector<8x256xf32>
    %118 = tpu.matmul %116, %117, %cst_68 {dimension_numbers = #tpu.dot_dimension_numbers<[1], [0], [0], [1], [0, 0, 1, 1], [], []>} : vector<8x8xbf16>, vector<8x256xbf16>, vector<8x256xf32> -> vector<8x256xf32>
    %119 = arith.addf %110, %118 : vector<8x256xf32>
    %c16_i32_69 = arith.constant 16 : i32
    %120 = tpu.dynamic_rotate %107 by %c16_i32_69 dim 1 : vector<8x256xf32>, i32 -> vector<8x256xf32>
    %c1_70 = arith.constant 1 : index
    %c0_71 = arith.constant 0 : index
    %121 = vector.load %arg2[%c1_70, %c0_71] : memref<9x256xf32, #tpu.memory_space<vmem>>, vector<1x256xf32>
    %122 = vector.broadcast %121 : vector<1x256xf32> to vector<8x256xf32>
    %123 = arith.mulf %120, %122 : vector<8x256xf32>
    %c1_72 = arith.constant 1 : index
    %c0_73 = arith.constant 0 : index
    %c0_74 = arith.constant 0 : index
    %124 = vector.load %arg6[%c1_72, %c0_73, %c0_74] : memref<9x8x8xbf16, #tpu.memory_space<vmem>>, vector<1x8x8xbf16>
    %125 = vector.shape_cast %124 : vector<1x8x8xbf16> to vector<8x8xbf16>
    %126 = arith.truncf %123 : vector<8x256xf32> to vector<8x256xbf16>
    %cst_75 = arith.constant dense<0.000000e+00> : vector<8x256xf32>
    %127 = tpu.matmul %125, %126, %cst_75 {dimension_numbers = #tpu.dot_dimension_numbers<[1], [0], [0], [1], [0, 0, 1, 1], [], []>} : vector<8x8xbf16>, vector<8x256xbf16>, vector<8x256xf32> -> vector<8x256xf32>
    %128 = arith.addf %119, %127 : vector<8x256xf32>
    %c15_i32_76 = arith.constant 15 : i32
    %129 = tpu.dynamic_rotate %107 by %c15_i32_76 dim 1 : vector<8x256xf32>, i32 -> vector<8x256xf32>
    %c2_77 = arith.constant 2 : index
    %c0_78 = arith.constant 0 : index
    %130 = vector.load %arg2[%c2_77, %c0_78] : memref<9x256xf32, #tpu.memory_space<vmem>>, vector<1x256xf32>
    %131 = vector.broadcast %130 : vector<1x256xf32> to vector<8x256xf32>
    %132 = arith.mulf %129, %131 : vector<8x256xf32>
    %c2_79 = arith.constant 2 : index
    %c0_80 = arith.constant 0 : index
    %c0_81 = arith.constant 0 : index
    %133 = vector.load %arg6[%c2_79, %c0_80, %c0_81] : memref<9x8x8xbf16, #tpu.memory_space<vmem>>, vector<1x8x8xbf16>
    %134 = vector.shape_cast %133 : vector<1x8x8xbf16> to vector<8x8xbf16>
    %135 = arith.truncf %132 : vector<8x256xf32> to vector<8x256xbf16>
    %cst_82 = arith.constant dense<0.000000e+00> : vector<8x256xf32>
    %136 = tpu.matmul %134, %135, %cst_82 {dimension_numbers = #tpu.dot_dimension_numbers<[1], [0], [0], [1], [0, 0, 1, 1], [], []>} : vector<8x8xbf16>, vector<8x256xbf16>, vector<8x256xf32> -> vector<8x256xf32>
    %137 = arith.addf %128, %136 : vector<8x256xf32>
    %c1_i32_83 = arith.constant 1 : i32
    %138 = tpu.dynamic_rotate %107 by %c1_i32_83 dim 1 : vector<8x256xf32>, i32 -> vector<8x256xf32>
    %c3_84 = arith.constant 3 : index
    %c0_85 = arith.constant 0 : index
    %139 = vector.load %arg2[%c3_84, %c0_85] : memref<9x256xf32, #tpu.memory_space<vmem>>, vector<1x256xf32>
    %140 = vector.broadcast %139 : vector<1x256xf32> to vector<8x256xf32>
    %141 = arith.mulf %138, %140 : vector<8x256xf32>
    %c3_86 = arith.constant 3 : index
    %c0_87 = arith.constant 0 : index
    %c0_88 = arith.constant 0 : index
    %142 = vector.load %arg6[%c3_86, %c0_87, %c0_88] : memref<9x8x8xbf16, #tpu.memory_space<vmem>>, vector<1x8x8xbf16>
    %143 = vector.shape_cast %142 : vector<1x8x8xbf16> to vector<8x8xbf16>
    %144 = arith.truncf %141 : vector<8x256xf32> to vector<8x256xbf16>
    %cst_89 = arith.constant dense<0.000000e+00> : vector<8x256xf32>
    %145 = tpu.matmul %143, %144, %cst_89 {dimension_numbers = #tpu.dot_dimension_numbers<[1], [0], [0], [1], [0, 0, 1, 1], [], []>} : vector<8x8xbf16>, vector<8x256xbf16>, vector<8x256xf32> -> vector<8x256xf32>
    %146 = arith.addf %137, %145 : vector<8x256xf32>
    %c4_90 = arith.constant 4 : index
    %c0_91 = arith.constant 0 : index
    %c0_92 = arith.constant 0 : index
    %147 = vector.load %arg6[%c4_90, %c0_91, %c0_92] : memref<9x8x8xbf16, #tpu.memory_space<vmem>>, vector<1x8x8xbf16>
    %148 = vector.shape_cast %147 : vector<1x8x8xbf16> to vector<8x8xbf16>
    %149 = arith.truncf %107 : vector<8x256xf32> to vector<8x256xbf16>
    %cst_93 = arith.constant dense<0.000000e+00> : vector<8x256xf32>
    %150 = tpu.matmul %148, %149, %cst_93 {dimension_numbers = #tpu.dot_dimension_numbers<[1], [0], [0], [1], [0, 0, 1, 1], [], []>} : vector<8x8xbf16>, vector<8x256xbf16>, vector<8x256xf32> -> vector<8x256xf32>
    %151 = arith.addf %146, %150 : vector<8x256xf32>
    %c255_i32_94 = arith.constant 255 : i32
    %152 = tpu.dynamic_rotate %107 by %c255_i32_94 dim 1 : vector<8x256xf32>, i32 -> vector<8x256xf32>
    %c5_95 = arith.constant 5 : index
    %c0_96 = arith.constant 0 : index
    %153 = vector.load %arg2[%c5_95, %c0_96] : memref<9x256xf32, #tpu.memory_space<vmem>>, vector<1x256xf32>
    %154 = vector.broadcast %153 : vector<1x256xf32> to vector<8x256xf32>
    %155 = arith.mulf %152, %154 : vector<8x256xf32>
    %c5_97 = arith.constant 5 : index
    %c0_98 = arith.constant 0 : index
    %c0_99 = arith.constant 0 : index
    %156 = vector.load %arg6[%c5_97, %c0_98, %c0_99] : memref<9x8x8xbf16, #tpu.memory_space<vmem>>, vector<1x8x8xbf16>
    %157 = vector.shape_cast %156 : vector<1x8x8xbf16> to vector<8x8xbf16>
    %158 = arith.truncf %155 : vector<8x256xf32> to vector<8x256xbf16>
    %cst_100 = arith.constant dense<0.000000e+00> : vector<8x256xf32>
    %159 = tpu.matmul %157, %158, %cst_100 {dimension_numbers = #tpu.dot_dimension_numbers<[1], [0], [0], [1], [0, 0, 1, 1], [], []>} : vector<8x8xbf16>, vector<8x256xbf16>, vector<8x256xf32> -> vector<8x256xf32>
    %160 = arith.addf %151, %159 : vector<8x256xf32>
    %c241_i32_101 = arith.constant 241 : i32
    %161 = tpu.dynamic_rotate %107 by %c241_i32_101 dim 1 : vector<8x256xf32>, i32 -> vector<8x256xf32>
    %c6_102 = arith.constant 6 : index
    %c0_103 = arith.constant 0 : index
    %162 = vector.load %arg2[%c6_102, %c0_103] : memref<9x256xf32, #tpu.memory_space<vmem>>, vector<1x256xf32>
    %163 = vector.broadcast %162 : vector<1x256xf32> to vector<8x256xf32>
    %164 = arith.mulf %161, %163 : vector<8x256xf32>
    %c6_104 = arith.constant 6 : index
    %c0_105 = arith.constant 0 : index
    %c0_106 = arith.constant 0 : index
    %165 = vector.load %arg6[%c6_104, %c0_105, %c0_106] : memref<9x8x8xbf16, #tpu.memory_space<vmem>>, vector<1x8x8xbf16>
    %166 = vector.shape_cast %165 : vector<1x8x8xbf16> to vector<8x8xbf16>
    %167 = arith.truncf %164 : vector<8x256xf32> to vector<8x256xbf16>
    %cst_107 = arith.constant dense<0.000000e+00> : vector<8x256xf32>
    %168 = tpu.matmul %166, %167, %cst_107 {dimension_numbers = #tpu.dot_dimension_numbers<[1], [0], [0], [1], [0, 0, 1, 1], [], []>} : vector<8x8xbf16>, vector<8x256xbf16>, vector<8x256xf32> -> vector<8x256xf32>
    %169 = arith.addf %160, %168 : vector<8x256xf32>
    %c240_i32_108 = arith.constant 240 : i32
    %170 = tpu.dynamic_rotate %107 by %c240_i32_108 dim 1 : vector<8x256xf32>, i32 -> vector<8x256xf32>
    %c7_109 = arith.constant 7 : index
    %c0_110 = arith.constant 0 : index
    %171 = vector.load %arg2[%c7_109, %c0_110] : memref<9x256xf32, #tpu.memory_space<vmem>>, vector<1x256xf32>
    %172 = vector.broadcast %171 : vector<1x256xf32> to vector<8x256xf32>
    %173 = arith.mulf %170, %172 : vector<8x256xf32>
    %c7_111 = arith.constant 7 : index
    %c0_112 = arith.constant 0 : index
    %c0_113 = arith.constant 0 : index
    %174 = vector.load %arg6[%c7_111, %c0_112, %c0_113] : memref<9x8x8xbf16, #tpu.memory_space<vmem>>, vector<1x8x8xbf16>
    %175 = vector.shape_cast %174 : vector<1x8x8xbf16> to vector<8x8xbf16>
    %176 = arith.truncf %173 : vector<8x256xf32> to vector<8x256xbf16>
    %cst_114 = arith.constant dense<0.000000e+00> : vector<8x256xf32>
    %177 = tpu.matmul %175, %176, %cst_114 {dimension_numbers = #tpu.dot_dimension_numbers<[1], [0], [0], [1], [0, 0, 1, 1], [], []>} : vector<8x8xbf16>, vector<8x256xbf16>, vector<8x256xf32> -> vector<8x256xf32>
    %178 = arith.addf %169, %177 : vector<8x256xf32>
    %c239_i32_115 = arith.constant 239 : i32
    %179 = tpu.dynamic_rotate %107 by %c239_i32_115 dim 1 : vector<8x256xf32>, i32 -> vector<8x256xf32>
    %c8_116 = arith.constant 8 : index
    %c0_117 = arith.constant 0 : index
    %180 = vector.load %arg2[%c8_116, %c0_117] : memref<9x256xf32, #tpu.memory_space<vmem>>, vector<1x256xf32>
    %181 = vector.broadcast %180 : vector<1x256xf32> to vector<8x256xf32>
    %182 = arith.mulf %179, %181 : vector<8x256xf32>
    %c8_118 = arith.constant 8 : index
    %c0_119 = arith.constant 0 : index
    %c0_120 = arith.constant 0 : index
    %183 = vector.load %arg6[%c8_118, %c0_119, %c0_120] : memref<9x8x8xbf16, #tpu.memory_space<vmem>>, vector<1x8x8xbf16>
    %184 = vector.shape_cast %183 : vector<1x8x8xbf16> to vector<8x8xbf16>
    %185 = arith.truncf %182 : vector<8x256xf32> to vector<8x256xbf16>
    %cst_121 = arith.constant dense<0.000000e+00> : vector<8x256xf32>
    %186 = tpu.matmul %184, %185, %cst_121 {dimension_numbers = #tpu.dot_dimension_numbers<[1], [0], [0], [1], [0, 0, 1, 1], [], []>} : vector<8x8xbf16>, vector<8x256xbf16>, vector<8x256xf32> -> vector<8x256xf32>
    %187 = arith.addf %178, %186 : vector<8x256xf32>
    %cst_122 = arith.constant dense<0.000000e+00> : vector<8xf32>
    %188 = vector.multi_reduction <add>, %187, %cst_122 [1] : vector<8x256xf32> to vector<8xf32>
    %189 = vector.shape_cast %188 : vector<8xf32> to vector<8x1xf32>
    %cst_123 = arith.constant 3.906250e-03 : f32
    %190 = vector.broadcast %cst_123 : f32 to vector<8x1xf32>
    %191 = arith.mulf %189, %190 : vector<8x1xf32>
    %192 = arith.mulf %187, %187 : vector<8x256xf32>
    %cst_124 = arith.constant dense<0.000000e+00> : vector<8xf32>
    %193 = vector.multi_reduction <add>, %192, %cst_124 [1] : vector<8x256xf32> to vector<8xf32>
    %194 = vector.shape_cast %193 : vector<8xf32> to vector<8x1xf32>
    %cst_125 = arith.constant 3.906250e-03 : f32
    %195 = vector.broadcast %cst_125 : f32 to vector<8x1xf32>
    %196 = arith.mulf %194, %195 : vector<8x1xf32>
    %197 = arith.mulf %191, %191 : vector<8x1xf32>
    %198 = arith.subf %196, %197 : vector<8x1xf32>
    %cst_126 = arith.constant 0.000000e+00 : f32
    %199 = vector.broadcast %cst_126 : f32 to vector<8x1xf32>
    %200 = arith.maximumf %198, %199 : vector<8x1xf32>
    %201 = vector.broadcast %191 : vector<8x1xf32> to vector<8x256xf32>
    %202 = arith.subf %187, %201 : vector<8x256xf32>
    %cst_127 = arith.constant 9.99999974E-6 : f32
    %203 = vector.broadcast %cst_127 : f32 to vector<8x1xf32>
    %204 = arith.addf %200, %203 : vector<8x1xf32>
    %205 = math.rsqrt %204 : vector<8x1xf32>
    %206 = vector.broadcast %205 : vector<8x1xf32> to vector<8x256xf32>
    %207 = arith.mulf %202, %206 : vector<8x256xf32>
    %208 = vector.broadcast %108 : vector<8x1xf32> to vector<8x256xf32>
    %209 = arith.mulf %207, %208 : vector<8x256xf32>
    %210 = vector.broadcast %109 : vector<8x1xf32> to vector<8x256xf32>
    %211 = arith.addf %209, %210 : vector<8x256xf32>
    %cst_128 = arith.constant 0.000000e+00 : f32
    %212 = vector.broadcast %cst_128 : f32 to vector<8x256xf32>
    %213 = arith.maximumf %211, %212 : vector<8x256xf32>
    %c0_129 = arith.constant 0 : index
    %c0_130 = arith.constant 0 : index
    %c0_131 = arith.constant 0 : index
    %214 = vector.load %arg9[%c0_129, %c0_130, %c0_131] : memref<1x8x256xf32, #tpu.memory_space<vmem>>, vector<1x8x256xf32>
    %215 = vector.shape_cast %214 : vector<1x8x256xf32> to vector<8x256xf32>
    %216 = vector.shape_cast %213 : vector<8x256xf32> to vector<1x8x256xf32>
    tpu.vector_store %arg9[%c0_129, %c0_130, %c0_131], %216 {strides = array<i32>} : memref<1x8x256xf32, #tpu.memory_space<vmem>>, vector<1x8x256xf32>,
    return
  }
  func.func @transform_0(%arg0: i32) -> (i32, i32, i32) {
    %c0_i32 = arith.constant 0 : i32
    %c0_i32_0 = arith.constant 0 : i32
    %c0_i32_1 = arith.constant 0 : i32
    return %arg0, %c0_i32, %c0_i32_0 : i32, i32, i32
  }
  func.func @transform_1(%arg0: i32) -> (i32, i32) {
    %c0_i32 = arith.constant 0 : i32
    %c0_i32_0 = arith.constant 0 : i32
    %c0_i32_1 = arith.constant 0 : i32
    return %c0_i32, %c0_i32_0 : i32, i32
  }
  func.func @transform_2(%arg0: i32) -> (i32, i32, i32) {
    %c0_i32 = arith.constant 0 : i32
    %c0_i32_0 = arith.constant 0 : i32
    %c0_i32_1 = arith.constant 0 : i32
    %c0_i32_2 = arith.constant 0 : i32
    return %c0_i32, %c0_i32_0, %c0_i32_1 : i32, i32, i32
  }
  func.func @transform_3(%arg0: i32) -> (i32, i32) {
    %c0_i32 = arith.constant 0 : i32
    %c0_i32_0 = arith.constant 0 : i32
    %c0_i32_1 = arith.constant 0 : i32
    return %c0_i32, %c0_i32_0 : i32, i32
  }
  func.func @transform_4(%arg0: i32) -> (i32, i32) {
    %c0_i32 = arith.constant 0 : i32
    %c0_i32_0 = arith.constant 0 : i32
    %c0_i32_1 = arith.constant 0 : i32
    return %c0_i32, %c0_i32_0 : i32, i32
  }
  func.func @transform_5(%arg0: i32) -> (i32, i32, i32) {
    %c0_i32 = arith.constant 0 : i32
    %c0_i32_0 = arith.constant 0 : i32
    %c0_i32_1 = arith.constant 0 : i32
    %c0_i32_2 = arith.constant 0 : i32
    return %c0_i32, %c0_i32_0, %c0_i32_1 : i32, i32, i32
  }
  func.func @transform_6(%arg0: i32) -> (i32, i32) {
    %c0_i32 = arith.constant 0 : i32
    %c0_i32_0 = arith.constant 0 : i32
    %c0_i32_1 = arith.constant 0 : i32
    return %c0_i32, %c0_i32_0 : i32, i32
  }
  func.func @transform_7(%arg0: i32) -> (i32, i32) {
    %c0_i32 = arith.constant 0 : i32
    %c0_i32_0 = arith.constant 0 : i32
    %c0_i32_1 = arith.constant 0 : i32
    return %c0_i32, %c0_i32_0 : i32, i32
  }
  func.func @transform_8(%arg0: i32) -> (i32, i32, i32) {
    %c0_i32 = arith.constant 0 : i32
    %c0_i32_0 = arith.constant 0 : i32
    %c0_i32_1 = arith.constant 0 : i32
    return %arg0, %c0_i32, %c0_i32_0 : i32, i32, i32
  }
}

</mosaic_0001>

<llo_original>
// kernel: tpu_custom_call.1
$region0: #{tpu_custom_call.1}
  #allocation0 [shape = 'u32[]', space=smem, size = 0x4, offset = 0x4, fixed_abs, tag = 'smem constant byte address 0x4 - core index']
  #allocation1 [shape = 'u32[144,128]{1,0:T(1,128)}', space=vmem, size = 0x12000, scoped, tag = 'internal scratch']
  %s0 = inlined_call_operand.vmem [shape: f32[2,8,256], index: 0, kind: input, shape index: {}]
  %s1 = inlined_call_operand.vmem [shape: f32[9,256], index: 1, kind: input, shape index: {}]
  %s2 = inlined_call_operand.vmem [shape: bf16[9,8,8], index: 2, kind: input, shape index: {}]
  %s3 = inlined_call_operand.vmem [shape: f32[8,1], index: 3, kind: input, shape index: {}]
  %s4 = inlined_call_operand.vmem [shape: f32[8,1], index: 4, kind: input, shape index: {}]
  %s5 = inlined_call_operand.vmem [shape: bf16[9,8,8], index: 5, kind: input, shape index: {}]
  %s6 = inlined_call_operand.vmem [shape: f32[8,1], index: 6, kind: input, shape index: {}]
  %s7 = inlined_call_operand.vmem [shape: f32[8,1], index: 7, kind: input, shape index: {}]
  %s8 = inlined_call_operand.hbm [shape: f32[2,8,256], index: 8, kind: output, shape index: {}]
  %s9 = sld [smem:[#allocation0]]
  $region65: #{tpu_custom_call.1} parent=0
    _
  %s11 = ssub.s32 1, %s9
  %s12 = scalar_select 0, %s11, %s9
  $region1: #{tpu_custom_call.1} parent=0
    #allocation2 [shape = 'u8[16384]{0}', space=vmem, size = 0x4000, scoped, tag = 'output window, operand 0']
    #allocation3 [shape = 's32[2]{0}', space=sflag, size = 0x8, scoped, tag = 'scoped memory for tpu_custom_call.1']
    %13 = vsyncpa [#allocation3], 0
    %s14 = scalar_lea.sflag [#allocation3], 1
    %15 = vsyncpa %s14, 0
    loop: start=0, step=1, limit=4
    $region2: #{tpu_custom_call.1} parent=1 // loop_pre_header
      _
    $region3: #{tpu_custom_call.1} parent=1 // loop_header
      %s17 = sphi 0, %s21
      %p18 = scmp.ge.s32.totalorder %s17, 4
      %s27 = sphi 0, %s29
      %s30 = sphi 0, %s27
      %s31 = sphi 0, %s30
      %s47 = sphi 0, %s31
      %s51 = sphi 0, %s51
      %s53 = sphi 0, %s51
      %s54 = sphi 0, %s53
      %s68 = sphi 0, %s54
      %s72 = sphi 0, %s72
      %s74 = sphi 0, %s72
      %s75 = sphi 0, %s74
      %s89 = sphi 0, %s75
      %s93 = sphi 0, %s93
      %s95 = sphi 0, %s93
      %s96 = sphi 0, %s95
      %s110 = sphi 0, %s96
      %s114 = sphi 0, %s114
      %s116 = sphi 0, %s114
      %s117 = sphi 0, %s116
      %s131 = sphi 0, %s117
      %s135 = sphi 0, %s135
      %s137 = sphi 0, %s135
      %s138 = sphi 0, %s137
      %s152 = sphi 0, %s138
      %s156 = sphi 0, %s156
      %s158 = sphi 0, %s156
      %s159 = sphi 0, %s158
      %s173 = sphi 0, %s159
      %s177 = sphi 0, %s177
      %s179 = sphi 0, %s177
      %s180 = sphi 0, %s179
      %s194 = sphi 0, %s180
      %s200 = sphi 0, %s202
      %s203 = sphi 0, %s200
      %s204 = sphi 0, %s203
      %s220 = sphi 0, %s204
    $region4: #{tpu_custom_call.1} parent=1 // loop_header_branch
      %20 = sbr.rel (%p18) target = $region8
    $region5: #{tpu_custom_call.1} parent=1 // loop_body
      %s22 = ssub.s32 %s17, 1
      %s23 = ssub.s32 %s17, 2
      %s24 = sadd.s32 %s17, 1
      %s25 = ssub.s32 %s17, %s24
      %p26 = scmp.eq.s32.totalorder %s25, 0
      %s28 = sadd.s32 %s27, 1
      %s29 = scalar_select %p26, %s27, %s28
      %p32 = pneg %p26
      %p33 = scmp.eq.s32.totalorder %s17, 1
      %p34 = por %p32, %p33
      %p35 = scmp.ne.s32.totalorder %s27, %s30
      %p36 = scmp.eq.s32.totalorder %s17, 0
      %p37 = por %p35, %p36
      %p38 = scmp.ne.s32.totalorder %s27, %s30
      %p39 = scmp.eq.s32.totalorder %s22, 1
      %p40 = por %p38, %p39
      %p41 = scmp.ne.s32.totalorder %s30, %s31
      %p42 = scmp.eq.s32.totalorder %s22, 0
      %p43 = por %p41, %p42
      %p44 = scmp.ne.s32.totalorder %s30, %s31
      %p45 = scmp.eq.s32.totalorder %s23, 1
      %p46 = por %p44, %p45
      %p48 = scmp.ne.s32.totalorder %s31, %s47
      %p49 = scmp.eq.s32.totalorder %s23, 0
      %p50 = por %p48, %p49
      %s52 = sadd.s32 %s51, 1
      %p55 = scmp.eq.s32.totalorder %s17, 1
      %p56 = scmp.ne.s32.totalorder %s51, %s53
      %p57 = scmp.eq.s32.totalorder %s17, 0
      %p58 = por %p56, %p57
      %p59 = scmp.ne.s32.totalorder %s51, %s53
      %p60 = scmp.eq.s32.totalorder %s22, 1
      %p61 = por %p59, %p60
      %p62 = scmp.ne.s32.totalorder %s53, %s54
      %p63 = scmp.eq.s32.totalorder %s22, 0
      %p64 = por %p62, %p63
      %p65 = scmp.ne.s32.totalorder %s53, %s54
      %p66 = scmp.eq.s32.totalorder %s23, 1
      %p67 = por %p65, %p66
      %p69 = scmp.ne.s32.totalorder %s54, %s68
      %p70 = scmp.eq.s32.totalorder %s23, 0
      %p71 = por %p69, %p70
      %s73 = sadd.s32 %s72, 1
      %p76 = scmp.eq.s32.totalorder %s17, 1
      %p77 = scmp.ne.s32.totalorder %s72, %s74
      %p78 = scmp.eq.s32.totalorder %s17, 0
      %p79 = por %p77, %p78
      %p80 = scmp.ne.s32.totalorder %s72, %s74
      %p81 = scmp.eq.s32.totalorder %s22, 1
      %p82 = por %p80, %p81
      %p83 = scmp.ne.s32.totalorder %s74, %s75
      %p84 = scmp.eq.s32.totalorder %s22, 0
      %p85 = por %p83, %p84
      %p86 = scmp.ne.s32.totalorder %s74, %s75
      %p87 = scmp.eq.s32.totalorder %s23, 1
      %p88 = por %p86, %p87
      %p90 = scmp.ne.s32.totalorder %s75, %s89
      %p91 = scmp.eq.s32.totalorder %s23, 0
      %p92 = por %p90, %p91
      %s94 = sadd.s32 %s93, 1
      %p97 = scmp.eq.s32.totalorder %s17, 1
      %p98 = scmp.ne.s32.totalorder %s93, %s95
      %p99 = scmp.eq.s32.totalorder %s17, 0
      %p100 = por %p98, %p99
      %p101 = scmp.ne.s32.totalorder %s93, %s95
      %p102 = scmp.eq.s32.totalorder %s22, 1
      %p103 = por %p101, %p102
      %p104 = scmp.ne.s32.totalorder %s95, %s96
      %p105 = scmp.eq.s32.totalorder %s22, 0
      %p106 = por %p104, %p105
      %p107 = scmp.ne.s32.totalorder %s95, %s96
      %p108 = scmp.eq.s32.totalorder %s23, 1
      %p109 = por %p107, %p108
      %p111 = scmp.ne.s32.totalorder %s96, %s110
      %p112 = scmp.eq.s32.totalorder %s23, 0
      %p113 = por %p111, %p112
      %s115 = sadd.s32 %s114, 1
      %p118 = scmp.eq.s32.totalorder %s17, 1
      %p119 = scmp.ne.s32.totalorder %s114, %s116
      %p120 = scmp.eq.s32.totalorder %s17, 0
      %p121 = por %p119, %p120
      %p122 = scmp.ne.s32.totalorder %s114, %s116
      %p123 = scmp.eq.s32.totalorder %s22, 1
      %p124 = por %p122, %p123
      %p125 = scmp.ne.s32.totalorder %s116, %s117
      %p126 = scmp.eq.s32.totalorder %s22, 0
      %p127 = por %p125, %p126
      %p128 = scmp.ne.s32.totalorder %s116, %s117
      %p129 = scmp.eq.s32.totalorder %s23, 1
      %p130 = por %p128, %p129
      %p132 = scmp.ne.s32.totalorder %s117, %s131
      %p133 = scmp.eq.s32.totalorder %s23, 0
      %p134 = por %p132, %p133
      %s136 = sadd.s32 %s135, 1
      %p139 = scmp.eq.s32.totalorder %s17, 1
      %p140 = scmp.ne.s32.totalorder %s135, %s137
      %p141 = scmp.eq.s32.totalorder %s17, 0
      %p142 = por %p140, %p141
      %p143 = scmp.ne.s32.totalorder %s135, %s137
      %p144 = scmp.eq.s32.totalorder %s22, 1
      %p145 = por %p143, %p144
      %p146 = scmp.ne.s32.totalorder %s137, %s138
      %p147 = scmp.eq.s32.totalorder %s22, 0
      %p148 = por %p146, %p147
      %p149 = scmp.ne.s32.totalorder %s137, %s138
      %p150 = scmp.eq.s32.totalorder %s23, 1
      %p151 = por %p149, %p150
      %p153 = scmp.ne.s32.totalorder %s138, %s152
      %p154 = scmp.eq.s32.totalorder %s23, 0
      %p155 = por %p153, %p154
      %s157 = sadd.s32 %s156, 1
      %p160 = scmp.eq.s32.totalorder %s17, 1
      %p161 = scmp.ne.s32.totalorder %s156, %s158
      %p162 = scmp.eq.s32.totalorder %s17, 0
      %p163 = por %p161, %p162
      %p164 = scmp.ne.s32.totalorder %s156, %s158
      %p165 = scmp.eq.s32.totalorder %s22, 1
      %p166 = por %p164, %p165
      %p167 = scmp.ne.s32.totalorder %s158, %s159
      %p168 = scmp.eq.s32.totalorder %s22, 0
      %p169 = por %p167, %p168
      %p170 = scmp.ne.s32.totalorder %s158, %s159
      %p171 = scmp.eq.s32.totalorder %s23, 1
      %p172 = por %p170, %p171
      %p174 = scmp.ne.s32.totalorder %s159, %s173
      %p175 = scmp.eq.s32.totalorder %s23, 0
      %p176 = por %p174, %p175
      %s178 = sadd.s32 %s177, 1
      %p181 = scmp.eq.s32.totalorder %s17, 1
      %p182 = scmp.ne.s32.totalorder %s177, %s179
      %p183 = scmp.eq.s32.totalorder %s17, 0
      %p184 = por %p182, %p183
      %p185 = scmp.ne.s32.totalorder %s177, %s179
      %p186 = scmp.eq.s32.totalorder %s22, 1
      %p187 = por %p185, %p186
      %p188 = scmp.ne.s32.totalorder %s179, %s180
      %p189 = scmp.eq.s32.totalorder %s22, 0
      %p190 = por %p188, %p189
      %p191 = scmp.ne.s32.totalorder %s179, %s180
      %p192 = scmp.eq.s32.totalorder %s23, 1
      %p193 = por %p191, %p192
      %p195 = scmp.ne.s32.totalorder %s180, %s194
      %p196 = scmp.eq.s32.totalorder %s23, 0
      %p197 = por %p195, %p196
      %s198 = ssub.s32 %s17, %s24
      %p199 = scmp.eq.s32.totalorder %s198, 0
      %s201 = sadd.s32 %s200, 1
      %s202 = scalar_select %p199, %s200, %s201
      %p205 = pneg %p199
      %p206 = scmp.eq.s32.totalorder %s17, 1
      %p207 = por %p205, %p206
      %p208 = scmp.ne.s32.totalorder %s200, %s203
      %p209 = scmp.eq.s32.totalorder %s17, 0
      %p210 = por %p208, %p209
      %p211 = scmp.ne.s32.totalorder %s200, %s203
      %p212 = scmp.eq.s32.totalorder %s22, 1
      %p213 = por %p211, %p212
      %p214 = scmp.ne.s32.totalorder %s203, %s204
      %p215 = scmp.eq.s32.totalorder %s22, 0
      %p216 = por %p214, %p215
      %p217 = scmp.ne.s32.totalorder %s203, %s204
      %p218 = scmp.eq.s32.totalorder %s23, 1
      %p219 = por %p217, %p218
      %p221 = scmp.ne.s32.totalorder %s204, %s220
      %p222 = scmp.eq.s32.totalorder %s23, 0
      %p223 = por %p221, %p222
      %p224 = scmp.le.s32.totalorder 1, %s17
      %p225 = scmp.lt.s32.totalorder %s17, 3
      %p226 = pnand %p224, %p225
      %p227 = pneg %p226
      // Predicated region
      $region9: #{tpu_custom_call.1} parent=5 // pred_check
        _
      $region10: #{tpu_custom_call.1} parent=5 // pred_check_branch
        %229 = sbr.rel (%p226) target = $region12
      $region11: #{tpu_custom_call.1} parent=5 // pred_region
        %s230 = ssub.s32 %s17, 1
        // Predicated region
        $region13: #{tpu_custom_call.1} parent=11 // pred_check
          %p231 = pneg %p64
        $region14: #{tpu_custom_call.1} parent=11 // pred_check_branch
          %233 = sbr.rel (%p231) target = $region16
        $region15: #{tpu_custom_call.1} parent=11 // pred_region
          _
        $region16: #{tpu_custom_call.1} parent=11 // pred_fallthru
          _
        // Predicated region
        $region17: #{tpu_custom_call.1} parent=11 // pred_check
          %p234 = pneg %p85
        $region18: #{tpu_custom_call.1} parent=11 // pred_check_branch
          %236 = sbr.rel (%p234) target = $region20
        $region19: #{tpu_custom_call.1} parent=11 // pred_region
          _
        $region20: #{tpu_custom_call.1} parent=11 // pred_fallthru
          _
        // Predicated region
        $region21: #{tpu_custom_call.1} parent=11 // pred_check
          %p237 = pneg %p106
        $region22: #{tpu_custom_call.1} parent=11 // pred_check_branch
          %239 = sbr.rel (%p237) target = $region24
        $region23: #{tpu_custom_call.1} parent=11 // pred_region
          _
        $region24: #{tpu_custom_call.1} parent=11 // pred_fallthru
          _
        // Predicated region
        $region25: #{tpu_custom_call.1} parent=11 // pred_check
          %p240 = pneg %p127
        $region26: #{tpu_custom_call.1} parent=11 // pred_check_branch
          %242 = sbr.rel (%p240) target = $region28
        $region27: #{tpu_custom_call.1} parent=11 // pred_region
          _
        $region28: #{tpu_custom_call.1} parent=11 // pred_fallthru
          _
        // Predicated region
        $region29: #{tpu_custom_call.1} parent=11 // pred_check
          %p243 = pneg %p148
        $region30: #{tpu_custom_call.1} parent=11 // pred_check_branch
          %245 = sbr.rel (%p243) target = $region32
        $region31: #{tpu_custom_call.1} parent=11 // pred_region
          _
        $region32: #{tpu_custom_call.1} parent=11 // pred_fallthru
          _
        // Predicated region
        $region33: #{tpu_custom_call.1} parent=11 // pred_check
          %p246 = pneg %p169
        $region34: #{tpu_custom_call.1} parent=11 // pred_check_branch
          %248 = sbr.rel (%p246) target = $region36
        $region35: #{tpu_custom_call.1} parent=11 // pred_region
          _
        $region36: #{tpu_custom_call.1} parent=11 // pred_fallthru
          _
        // Predicated region
        $region37: #{tpu_custom_call.1} parent=11 // pred_check
          %p249 = pneg %p190
        $region38: #{tpu_custom_call.1} parent=11 // pred_check_branch
          %251 = sbr.rel (%p249) target = $region40
        $region39: #{tpu_custom_call.1} parent=11 // pred_region
          _
        $region40: #{tpu_custom_call.1} parent=11 // pred_fallthru
          _
      $region12: #{tpu_custom_call.1} parent=5 // pred_fallthru
        _
      %p252 = scmp.lt.s32.totalorder %s17, 2
      // Predicated region
      $region41: #{tpu_custom_call.1} parent=5 // pred_check
        %p253 = pneg %p252
      $region42: #{tpu_custom_call.1} parent=5 // pred_check_branch
        %255 = sbr.rel (%p253) target = $region44
      $region43: #{tpu_custom_call.1} parent=5 // pred_region
        // Predicated region
        $region45: #{tpu_custom_call.1} parent=43 // pred_check
          %p256 = pneg %p37
        $region46: #{tpu_custom_call.1} parent=43 // pred_check_branch
          %258 = sbr.rel (%p256) target = $region48
        $region47: #{tpu_custom_call.1} parent=43 // pred_region
          %p259 = scmp.lt.s32.totalorder %s17, 1
          %s260 = scalar_select %p259, %s17, 1
          %s261 = smul.addr %s260, 2
          %s262 = smul.addr %s261, 8
          %s263 = scalar_lea.vmem %s0, %s262
        $region48: #{tpu_custom_call.1} parent=43 // pred_fallthru
          _
      $region44: #{tpu_custom_call.1} parent=5 // pred_fallthru
        _
      %p264 = scmp.le.s32.totalorder 1, %s17
      %p265 = scmp.lt.s32.totalorder %s17, 3
      %p266 = pnand %p264, %p265
      %p267 = pneg %p266
      // Predicated region
      $region49: #{tpu_custom_call.1} parent=5 // pred_check
        _
      $region50: #{tpu_custom_call.1} parent=5 // pred_check_branch
        %269 = sbr.rel (%p266) target = $region52
      $region51: #{tpu_custom_call.1} parent=5 // pred_region
        %s270 = ssub.s32 %s17, 1
        %p271 = scmp.lt.s32.totalorder %s22, 1
        %s272 = scalar_select %p271, %s22, 1
        %s273 = smul.addr %s272, 2
        %s274 = smul.addr %s273, 8
        %s275 = scalar_lea.vmem %s0, %s274
        %p276 = pneg %p43
        %p277 = pneg %p40
        %p278 = pneg %p64
        %p279 = pneg %p61
        %p280 = pneg %p85
        %p281 = pneg %p82
        %p282 = pneg %p106
        %p283 = pneg %p103
        %p284 = pneg %p127
        %p285 = pneg %p124
        %p286 = pneg %p148
        %p287 = pneg %p145
        %p288 = pneg %p169
        %p289 = pneg %p166
        %p290 = pneg %p190
        %p291 = pneg %p187
        %p292 = pneg %p216
        %p293 = pneg %p213
        %s294 = sand.u32 %s203, 1
        %s295 = scalar_lea.sflag [#allocation3], %s294
        %s296 = sand.u32 %s203, 1
        %s297 = smul.addr %s296, 16
        %s298 = scalar_lea.vmem [#allocation2], %s297
        %p299 = scmp.lt.s32.totalorder %s22, 1
        %s300 = scalar_select %p299, %s22, 1
        %s301 = smul.addr %s300, 2
        %s302 = smul.addr %s301, 8
        %s303 = scalar_lea.vmem %s0, %s302
        %v305 = vld [vmem:[%s303] sm:$0xff]
        %v306 = vld [vmem:[%s303 + $0x8] sm:$0xff]
        %v307 = vld [vmem:[%s3] sm:$0xff]
        %v308 = vld [vmem:[%s4] sm:$0xff]
        %309 = vrot.lane.b32.xlu0 %v305, 17
        %v310 = vpop.permute.xlu0 %309
        %311 = vrot.lane.b32.xlu0 %v306, 17
        %v312 = vpop.permute.xlu0 %311
        %v313 = vlaneseq
        %v314 = vand.u32 %v313, 127
        %vm315 = vcmp.lt.s32.totalorder %v314, 17
        %v316 = vsel %vm315, %v310, %v312
        %v317 = vsel %vm315, %v312, %v310
        %v318 = vld [vmem:[%s1] ss:$8 sm:$0x3]
        %v320 = vlaneseq
        %v321 = vshrl.u32 %v320, 7
        %v322 = vsub.s32 0, %v321
        %v323 = vrot.slane %v318, %v322
        %v324 = vlaneseq
        %v325 = vshrl.u32 %v324, 7
        %v326 = vsub.s32 1, %v325
        %v327 = vrot.slane %v318, %v326
        %v330 = vmul.f32 %v317, %v323
        %v331 = vmul.f32 %v316, %v327
        %v332 = vld [vmem:[%s2] sm:$0xf]
        %v333 = vpack.c.bf16 %v330, %v330
        %v334 = vpack.c.bf16 %v331, %v331
        %335 = vrot.lane.b32.xlu0 %v305, 16
        %v336 = vpop.permute.xlu0 %335
        %337 = vrot.lane.b32.xlu0 %v306, 16
        %v338 = vpop.permute.xlu0 %337
        %vm339 = vcmp.lt.s32.totalorder %v314, 16
        %v340 = vsel %vm339, %v336, %v338
        %v341 = vsel %vm339, %v338, %v336
        %s342 = scalar_lea.vmem %s1, 1
        %v343 = vld [vmem:[%s342] ss:$8 sm:$0x3]
        %v345 = vlaneseq
        %v346 = vshrl.u32 %v345, 7
        %v347 = vsub.s32 0, %v346
        %v348 = vrot.slane %v343, %v347
        %v349 = vlaneseq
        %v350 = vshrl.u32 %v349, 7
        %v351 = vsub.s32 1, %v350
        %v352 = vrot.slane %v343, %v351
        %v355 = vmul.f32 %v341, %v348
        %v356 = vmul.f32 %v340, %v352
        %s357 = scalar_lea.vmem %s2, 4
        %v358 = vld [vmem:[%s357] sm:$0xf]
        %v359 = vpack.c.bf16 %v355, %v355
        %v360 = vpack.c.bf16 %v356, %v356
        %vm361 = vcmask 64512
        %v363 = vsel %vm361, %v358, 0
        %vm365 = vcmask 1043456
        %v367 = vsel %vm365, %v359, 0
        %v370 = vsel %vm365, %v360, 0
        %372 = vmatprep.subr.bf16.mxu0 %v370
        %373 = vmatpush1.bf16.msra.mxu0 %v367
        %374 = vmatprep.subr.bf16.mxu0 0
        %375 = vmatpush1.bf16.msra.mxu0 0
        %376 = vmatprep.subr.bf16.mxu0 0
        %377 = vmatpush1.bf16.msra.mxu0 0
        %378 = vmatprep.subr.bf16.mxu0 0
        %379 = vmatpush1.bf16.msra.mxu0 0
        %380 = vmatprep.subr.bf16.mxu0 0
        %381 = vmatpush1.bf16.msra.mxu0 0
        %382 = vmatprep.subr.bf16.mxu0 0
        %383 = vmatpush1.bf16.msra.mxu0 0
        %384 = vmatprep.subr.bf16.mxu0 0
        %385 = vmatpush1.bf16.msra.mxu0 0
        %386 = vmatprep.subr.bf16.mxu0 0
        %387 = vmatpush1.bf16.msra.mxu0 0
        %388 = vmatprep.subr.bf16.mxu0 0
        %389 = vmatpush1.bf16.msra.mxu0 0
        %390 = vmatprep.subr.bf16.mxu0 0
        %391 = vmatpush1.bf16.msra.mxu0 0
        %392 = vmatprep.subr.bf16.mxu0 0
        %393 = vmatpush1.bf16.msra.mxu0 0
        %394 = vmatprep.subr.bf16.mxu0 0
        %395 = vmatpush1.bf16.msra.mxu0 0
        %396 = vmatprep.subr.bf16.mxu0 0
        %397 = vmatpush1.bf16.msra.mxu0 0
        %398 = vmatprep.subr.bf16.mxu0 0
        %399 = vmatpush1.bf16.msra.mxu0 0
        %400 = vmatprep.subr.bf16.mxu0 0
        %401 = vmatpush1.bf16.msra.mxu0 0
        %402 = vmatprep.subr.bf16.mxu0 0
        %403 = vmatpush1.bf16.msra.mxu0 0
        %404 = vmatprep.mubr.bf16.mxu0 0
        %405 = vmatmul.mubr.bf16.gmra.mrb[0].mxu0 %v363
        %v406 = vpop.f32.mrb[0].mxu0
        %v407 = vadd.f32 0.0, %v406
        %v408 = vpop.f32.mrb[0].mxu0
        %v409 = vadd.f32 0.0, %v408
        %v410 = vpop.f32.mrb[0].mxu0
        %v411 = vpop.f32.mrb[0].mxu0
        %412 = vdwg.mxu0
        %v414 = vsel %vm361, %v332, 0
        %v417 = vsel %vm365, %v333, 0
        %v420 = vsel %vm365, %v334, 0
        %422 = vmatprep.subr.bf16.mxu0 %v420
        %423 = vmatpush1.bf16.msra.mxu0 %v417
        %424 = vmatprep.subr.bf16.mxu0 0
        %425 = vmatpush1.bf16.msra.mxu0 0
        %426 = vmatprep.subr.bf16.mxu0 0
        %427 = vmatpush1.bf16.msra.mxu0 0
        %428 = vmatprep.subr.bf16.mxu0 0
        %429 = vmatpush1.bf16.msra.mxu0 0
        %430 = vmatprep.subr.bf16.mxu0 0
        %431 = vmatpush1.bf16.msra.mxu0 0
        %432 = vmatprep.subr.bf16.mxu0 0
        %433 = vmatpush1.bf16.msra.mxu0 0
        %434 = vmatprep.subr.bf16.mxu0 0
        %435 = vmatpush1.bf16.msra.mxu0 0
        %436 = vmatprep.subr.bf16.mxu0 0
        %437 = vmatpush1.bf16.msra.mxu0 0
        %438 = vmatprep.subr.bf16.mxu0 0
        %439 = vmatpush1.bf16.msra.mxu0 0
        %440 = vmatprep.subr.bf16.mxu0 0
        %441 = vmatpush1.bf16.msra.mxu0 0
        %442 = vmatprep.subr.bf16.mxu0 0
        %443 = vmatpush1.bf16.msra.mxu0 0
        %444 = vmatprep.subr.bf16.mxu0 0
        %445 = vmatpush1.bf16.msra.mxu0 0
        %446 = vmatprep.subr.bf16.mxu0 0
        %447 = vmatpush1.bf16.msra.mxu0 0
        %448 = vmatprep.subr.bf16.mxu0 0
        %449 = vmatpush1.bf16.msra.mxu0 0
        %450 = vmatprep.subr.bf16.mxu0 0
        %451 = vmatpush1.bf16.msra.mxu0 0
        %452 = vmatprep.subr.bf16.mxu0 0
        %453 = vmatpush1.bf16.msra.mxu0 0
        %454 = vmatprep.mubr.bf16.mxu0 0
        %455 = vmatmul.mubr.bf16.gmra.mrb[0].mxu0 %v414
        %v456 = vpop.f32.mrb[0].mxu0
        %v457 = vadd.f32 %v407, %v456
        %v458 = vpop.f32.mrb[0].mxu0
        %v459 = vadd.f32 %v409, %v458
        %v460 = vpop.f32.mrb[0].mxu0
        %v461 = vpop.f32.mrb[0].mxu0
        %462 = vdwg.mxu0
        %463 = vrot.lane.b32.xlu0 %v305, 15
        %v464 = vpop.permute.xlu0 %463
        %465 = vrot.lane.b32.xlu0 %v306, 15
        %v466 = vpop.permute.xlu0 %465
        %vm467 = vcmp.lt.s32.totalorder %v314, 15
        %v468 = vsel %vm467, %v464, %v466
        %v469 = vsel %vm467, %v466, %v464
        %s470 = scalar_lea.vmem %s1, 2
        %v471 = vld [vmem:[%s470] ss:$8 sm:$0x3]
        %v473 = vlaneseq
        %v474 = vshrl.u32 %v473, 7
        %v475 = vsub.s32 0, %v474
        %v476 = vrot.slane %v471, %v475
        %v477 = vlaneseq
        %v478 = vshrl.u32 %v477, 7
        %v479 = vsub.s32 1, %v478
        %v480 = vrot.slane %v471, %v479
        %v483 = vmul.f32 %v469, %v476
        %v484 = vmul.f32 %v468, %v480
        %s485 = scalar_lea.vmem %s2, 8
        %v486 = vld [vmem:[%s485] sm:$0xf]
        %v487 = vpack.c.bf16 %v483, %v483
        %v488 = vpack.c.bf16 %v484, %v484
        %v490 = vsel %vm361, %v486, 0
        %v493 = vsel %vm365, %v487, 0
        %v496 = vsel %vm365, %v488, 0
        %498 = vmatprep.subr.bf16.mxu0 %v496
        %499 = vmatpush1.bf16.msra.mxu0 %v493
        %500 = vmatprep.subr.bf16.mxu0 0
        %501 = vmatpush1.bf16.msra.mxu0 0
        %502 = vmatprep.subr.bf16.mxu0 0
        %503 = vmatpush1.bf16.msra.mxu0 0
        %504 = vmatprep.subr.bf16.mxu0 0
        %505 = vmatpush1.bf16.msra.mxu0 0
        %506 = vmatprep.subr.bf16.mxu0 0
        %507 = vmatpush1.bf16.msra.mxu0 0
        %508 = vmatprep.subr.bf16.mxu0 0
        %509 = vmatpush1.bf16.msra.mxu0 0
        %510 = vmatprep.subr.bf16.mxu0 0
        %511 = vmatpush1.bf16.msra.mxu0 0
        %512 = vmatprep.subr.bf16.mxu0 0
        %513 = vmatpush1.bf16.msra.mxu0 0
        %514 = vmatprep.subr.bf16.mxu0 0
        %515 = vmatpush1.bf16.msra.mxu0 0
        %516 = vmatprep.subr.bf16.mxu0 0
        %517 = vmatpush1.bf16.msra.mxu0 0
        %518 = vmatprep.subr.bf16.mxu0 0
        %519 = vmatpush1.bf16.msra.mxu0 0
        %520 = vmatprep.subr.bf16.mxu0 0
        %521 = vmatpush1.bf16.msra.mxu0 0
        %522 = vmatprep.subr.bf16.mxu0 0
        %523 = vmatpush1.bf16.msra.mxu0 0
        %524 = vmatprep.subr.bf16.mxu0 0
        %525 = vmatpush1.bf16.msra.mxu0 0
        %526 = vmatprep.subr.bf16.mxu0 0
        %527 = vmatpush1.bf16.msra.mxu0 0
        %528 = vmatprep.subr.bf16.mxu0 0
        %529 = vmatpush1.bf16.msra.mxu0 0
        %530 = vmatprep.mubr.bf16.mxu0 0
        %531 = vmatmul.mubr.bf16.gmra.mrb[0].mxu0 %v490
        %v532 = vpop.f32.mrb[0].mxu0
        %v533 = vadd.f32 0.0, %v532
        %v534 = vpop.f32.mrb[0].mxu0
        %v535 = vadd.f32 0.0, %v534
        %v536 = vpop.f32.mrb[0].mxu0
        %v537 = vpop.f32.mrb[0].mxu0
        %538 = vdwg.mxu0
        %v539 = vadd.f32 %v457, %v533
        %v540 = vadd.f32 %v459, %v535
        %541 = vrot.lane.b32.xlu0 %v305, 1
        %v542 = vpop.permute.xlu0 %541
        %543 = vrot.lane.b32.xlu0 %v306, 1
        %v544 = vpop.permute.xlu0 %543
        %vm545 = vcmp.lt.s32.totalorder %v314, 1
        %v546 = vsel %vm545, %v542, %v544
        %v547 = vsel %vm545, %v544, %v542
        %s548 = scalar_lea.vmem %s1, 3
        %v549 = vld [vmem:[%s548] ss:$8 sm:$0x3]
        %v551 = vlaneseq
        %v552 = vshrl.u32 %v551, 7
        %v553 = vsub.s32 0, %v552
        %v554 = vrot.slane %v549, %v553
        %v555 = vlaneseq
        %v556 = vshrl.u32 %v555, 7
        %v557 = vsub.s32 1, %v556
        %v558 = vrot.slane %v549, %v557
        %v561 = vmul.f32 %v547, %v554
        %v562 = vmul.f32 %v546, %v558
        %s563 = scalar_lea.vmem %s2, 12
        %v564 = vld [vmem:[%s563] sm:$0xf]
        %v565 = vpack.c.bf16 %v561, %v561
        %v566 = vpack.c.bf16 %v562, %v562
        %v568 = vsel %vm361, %v564, 0
        %v571 = vsel %vm365, %v565, 0
        %v574 = vsel %vm365, %v566, 0
        %576 = vmatprep.subr.bf16.mxu0 %v574
        %577 = vmatpush1.bf16.msra.mxu0 %v571
        %578 = vmatprep.subr.bf16.mxu0 0
        %579 = vmatpush1.bf16.msra.mxu0 0
        %580 = vmatprep.subr.bf16.mxu0 0
        %581 = vmatpush1.bf16.msra.mxu0 0
        %582 = vmatprep.subr.bf16.mxu0 0
        %583 = vmatpush1.bf16.msra.mxu0 0
        %584 = vmatprep.subr.bf16.mxu0 0
        %585 = vmatpush1.bf16.msra.mxu0 0
        %586 = vmatprep.subr.bf16.mxu0 0
        %587 = vmatpush1.bf16.msra.mxu0 0
        %588 = vmatprep.subr.bf16.mxu0 0
        %589 = vmatpush1.bf16.msra.mxu0 0
        %590 = vmatprep.subr.bf16.mxu0 0
        %591 = vmatpush1.bf16.msra.mxu0 0
        %592 = vmatprep.subr.bf16.mxu0 0
        %593 = vmatpush1.bf16.msra.mxu0 0
        %594 = vmatprep.subr.bf16.mxu0 0
        %595 = vmatpush1.bf16.msra.mxu0 0
        %596 = vmatprep.subr.bf16.mxu0 0
        %597 = vmatpush1.bf16.msra.mxu0 0
        %598 = vmatprep.subr.bf16.mxu0 0
        %599 = vmatpush1.bf16.msra.mxu0 0
        %600 = vmatprep.subr.bf16.mxu0 0
        %601 = vmatpush1.bf16.msra.mxu0 0
        %602 = vmatprep.subr.bf16.mxu0 0
        %603 = vmatpush1.bf16.msra.mxu0 0
        %604 = vmatprep.subr.bf16.mxu0 0
        %605 = vmatpush1.bf16.msra.mxu0 0
        %606 = vmatprep.subr.bf16.mxu0 0
        %607 = vmatpush1.bf16.msra.mxu0 0
        %608 = vmatprep.mubr.bf16.mxu0 0
        %609 = vmatmul.mubr.bf16.gmra.mrb[0].mxu0 %v568
        %v610 = vpop.f32.mrb[0].mxu0
        %v611 = vadd.f32 0.0, %v610
        %v612 = vpop.f32.mrb[0].mxu0
        %v613 = vadd.f32 0.0, %v612
        %v614 = vpop.f32.mrb[0].mxu0
        %v615 = vpop.f32.mrb[0].mxu0
        %616 = vdwg.mxu0
        %v617 = vadd.f32 %v539, %v611
        %v618 = vadd.f32 %v540, %v613
        %s619 = scalar_lea.vmem %s2, 16
        %v620 = vld [vmem:[%s619] sm:$0xf]
        %v621 = vpack.c.bf16 %v305, %v305
        %v622 = vpack.c.bf16 %v306, %v306
        %v624 = vsel %vm361, %v620, 0
        %v627 = vsel %vm365, %v621, 0
        %v630 = vsel %vm365, %v622, 0
        %632 = vmatprep.subr.bf16.mxu0 %v630
        %633 = vmatpush1.bf16.msra.mxu0 %v627
        %634 = vmatprep.subr.bf16.mxu0 0
        %635 = vmatpush1.bf16.msra.mxu0 0
        %636 = vmatprep.subr.bf16.mxu0 0
        %637 = vmatpush1.bf16.msra.mxu0 0
        %638 = vmatprep.subr.bf16.mxu0 0
        %639 = vmatpush1.bf16.msra.mxu0 0
        %640 = vmatprep.subr.bf16.mxu0 0
        %641 = vmatpush1.bf16.msra.mxu0 0
        %642 = vmatprep.subr.bf16.mxu0 0
        %643 = vmatpush1.bf16.msra.mxu0 0
        %644 = vmatprep.subr.bf16.mxu0 0
        %645 = vmatpush1.bf16.msra.mxu0 0
        %646 = vmatprep.subr.bf16.mxu0 0
        %647 = vmatpush1.bf16.msra.mxu0 0
        %648 = vmatprep.subr.bf16.mxu0 0
        %649 = vmatpush1.bf16.msra.mxu0 0
        %650 = vmatprep.subr.bf16.mxu0 0
        %651 = vmatpush1.bf16.msra.mxu0 0
        %652 = vmatprep.subr.bf16.mxu0 0
        %653 = vmatpush1.bf16.msra.mxu0 0
        %654 = vmatprep.subr.bf16.mxu0 0
        %655 = vmatpush1.bf16.msra.mxu0 0
        %656 = vmatprep.subr.bf16.mxu0 0
        %657 = vmatpush1.bf16.msra.mxu0 0
        %658 = vmatprep.subr.bf16.mxu0 0
        %659 = vmatpush1.bf16.msra.mxu0 0
        %660 = vmatprep.subr.bf16.mxu0 0
        %661 = vmatpush1.bf16.msra.mxu0 0
        %662 = vmatprep.subr.bf16.mxu0 0
        %663 = vmatpush1.bf16.msra.mxu0 0
        %664 = vmatprep.mubr.bf16.mxu0 0
        %665 = vmatmul.mubr.bf16.gmra.mrb[0].mxu0 %v624
        %v666 = vpop.f32.mrb[0].mxu0
        %v667 = vadd.f32 0.0, %v666
        %v668 = vpop.f32.mrb[0].mxu0
        %v669 = vadd.f32 0.0, %v668
        %v670 = vpop.f32.mrb[0].mxu0
        %v671 = vpop.f32.mrb[0].mxu0
        %672 = vdwg.mxu0
        %v673 = vadd.f32 %v617, %v667
        %v674 = vadd.f32 %v618, %v669
        %675 = vrot.lane.b32.xlu0 %v305, 127
        %v676 = vpop.permute.xlu0 %675
        %677 = vrot.lane.b32.xlu0 %v306, 127
        %v678 = vpop.permute.xlu0 %677
        %vm679 = vcmp.lt.s32.totalorder %v314, 127
        %v680 = vsel %vm679, %v676, %v678
        %v681 = vsel %vm679, %v678, %v676
        %s682 = scalar_lea.vmem %s1, 5
        %v683 = vld [vmem:[%s682] ss:$8 sm:$0x3]
        %v685 = vlaneseq
        %v686 = vshrl.u32 %v685, 7
        %v687 = vsub.s32 0, %v686
        %v688 = vrot.slane %v683, %v687
        %v689 = vlaneseq
        %v690 = vshrl.u32 %v689, 7
        %v691 = vsub.s32 1, %v690
        %v692 = vrot.slane %v683, %v691
        %v695 = vmul.f32 %v680, %v688
        %v696 = vmul.f32 %v681, %v692
        %s697 = scalar_lea.vmem %s2, 20
        %v698 = vld [vmem:[%s697] sm:$0xf]
        %v699 = vpack.c.bf16 %v695, %v695
        %v700 = vpack.c.bf16 %v696, %v696
        %v702 = vsel %vm361, %v698, 0
        %v705 = vsel %vm365, %v699, 0
        %v708 = vsel %vm365, %v700, 0
        %710 = vmatprep.subr.bf16.mxu0 %v708
        %711 = vmatpush1.bf16.msra.mxu0 %v705
        %712 = vmatprep.subr.bf16.mxu0 0
        %713 = vmatpush1.bf16.msra.mxu0 0
        %714 = vmatprep.subr.bf16.mxu0 0
        %715 = vmatpush1.bf16.msra.mxu0 0
        %716 = vmatprep.subr.bf16.mxu0 0
        %717 = vmatpush1.bf16.msra.mxu0 0
        %718 = vmatprep.subr.bf16.mxu0 0
        %719 = vmatpush1.bf16.msra.mxu0 0
        %720 = vmatprep.subr.bf16.mxu0 0
        %721 = vmatpush1.bf16.msra.mxu0 0
        %722 = vmatprep.subr.bf16.mxu0 0
        %723 = vmatpush1.bf16.msra.mxu0 0
        %724 = vmatprep.subr.bf16.mxu0 0
        %725 = vmatpush1.bf16.msra.mxu0 0
        %726 = vmatprep.subr.bf16.mxu0 0
        %727 = vmatpush1.bf16.msra.mxu0 0
        %728 = vmatprep.subr.bf16.mxu0 0
        %729 = vmatpush1.bf16.msra.mxu0 0
        %730 = vmatprep.subr.bf16.mxu0 0
        %731 = vmatpush1.bf16.msra.mxu0 0
        %732 = vmatprep.subr.bf16.mxu0 0
        %733 = vmatpush1.bf16.msra.mxu0 0
        %734 = vmatprep.subr.bf16.mxu0 0
        %735 = vmatpush1.bf16.msra.mxu0 0
        %736 = vmatprep.subr.bf16.mxu0 0
        %737 = vmatpush1.bf16.msra.mxu0 0
        %738 = vmatprep.subr.bf16.mxu0 0
        %739 = vmatpush1.bf16.msra.mxu0 0
        %740 = vmatprep.subr.bf16.mxu0 0
        %741 = vmatpush1.bf16.msra.mxu0 0
        %742 = vmatprep.mubr.bf16.mxu0 0
        %743 = vmatmul.mubr.bf16.gmra.mrb[0].mxu0 %v702
        %v744 = vpop.f32.mrb[0].mxu0
        %v745 = vadd.f32 0.0, %v744
        %v746 = vpop.f32.mrb[0].mxu0
        %v747 = vadd.f32 0.0, %v746
        %v748 = vpop.f32.mrb[0].mxu0
        %v749 = vpop.f32.mrb[0].mxu0
        %750 = vdwg.mxu0
        %v751 = vadd.f32 %v673, %v745
        %v752 = vadd.f32 %v674, %v747
        %753 = vrot.lane.b32.xlu0 %v305, 113
        %v754 = vpop.permute.xlu0 %753
        %755 = vrot.lane.b32.xlu0 %v306, 113
        %v756 = vpop.permute.xlu0 %755
        %vm757 = vcmp.lt.s32.totalorder %v314, 113
        %v758 = vsel %vm757, %v754, %v756
        %v759 = vsel %vm757, %v756, %v754
        %s760 = scalar_lea.vmem %s1, 6
        %v761 = vld [vmem:[%s760] ss:$8 sm:$0x3]
        %v763 = vlaneseq
        %v764 = vshrl.u32 %v763, 7
        %v765 = vsub.s32 0, %v764
        %v766 = vrot.slane %v761, %v765
        %v767 = vlaneseq
        %v768 = vshrl.u32 %v767, 7
        %v769 = vsub.s32 1, %v768
        %v770 = vrot.slane %v761, %v769
        %v773 = vmul.f32 %v758, %v766
        %v774 = vmul.f32 %v759, %v770
        %s775 = scalar_lea.vmem %s2, 24
        %v776 = vld [vmem:[%s775] sm:$0xf]
        %v777 = vpack.c.bf16 %v773, %v773
        %v778 = vpack.c.bf16 %v774, %v774
        %v780 = vsel %vm361, %v776, 0
        %v783 = vsel %vm365, %v777, 0
        %v786 = vsel %vm365, %v778, 0
        %788 = vmatprep.subr.bf16.mxu0 %v786
        %789 = vmatpush1.bf16.msra.mxu0 %v783
        %790 = vmatprep.subr.bf16.mxu0 0
        %791 = vmatpush1.bf16.msra.mxu0 0
        %792 = vmatprep.subr.bf16.mxu0 0
        %793 = vmatpush1.bf16.msra.mxu0 0
        %794 = vmatprep.subr.bf16.mxu0 0
        %795 = vmatpush1.bf16.msra.mxu0 0
        %796 = vmatprep.subr.bf16.mxu0 0
        %797 = vmatpush1.bf16.msra.mxu0 0
        %798 = vmatprep.subr.bf16.mxu0 0
        %799 = vmatpush1.bf16.msra.mxu0 0
        %800 = vmatprep.subr.bf16.mxu0 0
        %801 = vmatpush1.bf16.msra.mxu0 0
        %802 = vmatprep.subr.bf16.mxu0 0
        %803 = vmatpush1.bf16.msra.mxu0 0
        %804 = vmatprep.subr.bf16.mxu0 0
        %805 = vmatpush1.bf16.msra.mxu0 0
        %806 = vmatprep.subr.bf16.mxu0 0
        %807 = vmatpush1.bf16.msra.mxu0 0
        %808 = vmatprep.subr.bf16.mxu0 0
        %809 = vmatpush1.bf16.msra.mxu0 0
        %810 = vmatprep.subr.bf16.mxu0 0
        %811 = vmatpush1.bf16.msra.mxu0 0
        %812 = vmatprep.subr.bf16.mxu0 0
        %813 = vmatpush1.bf16.msra.mxu0 0
        %814 = vmatprep.subr.bf16.mxu0 0
        %815 = vmatpush1.bf16.msra.mxu0 0
        %816 = vmatprep.subr.bf16.mxu0 0
        %817 = vmatpush1.bf16.msra.mxu0 0
        %818 = vmatprep.subr.bf16.mxu0 0
        %819 = vmatpush1.bf16.msra.mxu0 0
        %820 = vmatprep.mubr.bf16.mxu0 0
        %821 = vmatmul.mubr.bf16.gmra.mrb[0].mxu0 %v780
        %v822 = vpop.f32.mrb[0].mxu0
        %v823 = vadd.f32 0.0, %v822
        %v824 = vpop.f32.mrb[0].mxu0
        %v825 = vadd.f32 0.0, %v824
        %v826 = vpop.f32.mrb[0].mxu0
        %v827 = vpop.f32.mrb[0].mxu0
        %828 = vdwg.mxu0
        %v829 = vadd.f32 %v751, %v823
        %v830 = vadd.f32 %v752, %v825
        %831 = vrot.lane.b32.xlu0 %v305, 112
        %v832 = vpop.permute.xlu0 %831
        %833 = vrot.lane.b32.xlu0 %v306, 112
        %v834 = vpop.permute.xlu0 %833
        %vm835 = vcmp.lt.s32.totalorder %v314, 112
        %v836 = vsel %vm835, %v832, %v834
        %v837 = vsel %vm835, %v834, %v832
        %s838 = scalar_lea.vmem %s1, 7
        %v839 = vld [vmem:[%s838] ss:$8 sm:$0x3]
        %v841 = vlaneseq
        %v842 = vshrl.u32 %v841, 7
        %v843 = vsub.s32 0, %v842
        %v844 = vrot.slane %v839, %v843
        %v845 = vlaneseq
        %v846 = vshrl.u32 %v845, 7
        %v847 = vsub.s32 1, %v846
        %v848 = vrot.slane %v839, %v847
        %v851 = vmul.f32 %v836, %v844
        %v852 = vmul.f32 %v837, %v848
        %s853 = scalar_lea.vmem %s2, 28
        %v854 = vld [vmem:[%s853] sm:$0xf]
        %v855 = vpack.c.bf16 %v851, %v851
        %v856 = vpack.c.bf16 %v852, %v852
        %v858 = vsel %vm361, %v854, 0
        %v861 = vsel %vm365, %v855, 0
        %v864 = vsel %vm365, %v856, 0
        %866 = vmatprep.subr.bf16.mxu0 %v864
        %867 = vmatpush1.bf16.msra.mxu0 %v861
        %868 = vmatprep.subr.bf16.mxu0 0
        %869 = vmatpush1.bf16.msra.mxu0 0
        %870 = vmatprep.subr.bf16.mxu0 0
        %871 = vmatpush1.bf16.msra.mxu0 0
        %872 = vmatprep.subr.bf16.mxu0 0
        %873 = vmatpush1.bf16.msra.mxu0 0
        %874 = vmatprep.subr.bf16.mxu0 0
        %875 = vmatpush1.bf16.msra.mxu0 0
        %876 = vmatprep.subr.bf16.mxu0 0
        %877 = vmatpush1.bf16.msra.mxu0 0
        %878 = vmatprep.subr.bf16.mxu0 0
        %879 = vmatpush1.bf16.msra.mxu0 0
        %880 = vmatprep.subr.bf16.mxu0 0
        %881 = vmatpush1.bf16.msra.mxu0 0
        %882 = vmatprep.subr.bf16.mxu0 0
        %883 = vmatpush1.bf16.msra.mxu0 0
        %884 = vmatprep.subr.bf16.mxu0 0
        %885 = vmatpush1.bf16.msra.mxu0 0
        %886 = vmatprep.subr.bf16.mxu0 0
        %887 = vmatpush1.bf16.msra.mxu0 0
        %888 = vmatprep.subr.bf16.mxu0 0
        %889 = vmatpush1.bf16.msra.mxu0 0
        %890 = vmatprep.subr.bf16.mxu0 0
        %891 = vmatpush1.bf16.msra.mxu0 0
        %892 = vmatprep.subr.bf16.mxu0 0
        %893 = vmatpush1.bf16.msra.mxu0 0
        %894 = vmatprep.subr.bf16.mxu0 0
        %895 = vmatpush1.bf16.msra.mxu0 0
        %896 = vmatprep.subr.bf16.mxu0 0
        %897 = vmatpush1.bf16.msra.mxu0 0
        %898 = vmatprep.mubr.bf16.mxu0 0
        %899 = vmatmul.mubr.bf16.gmra.mrb[0].mxu0 %v858
        %v900 = vpop.f32.mrb[0].mxu0
        %v901 = vadd.f32 0.0, %v900
        %v902 = vpop.f32.mrb[0].mxu0
        %v903 = vadd.f32 0.0, %v902
        %v904 = vpop.f32.mrb[0].mxu0
        %v905 = vpop.f32.mrb[0].mxu0
        %906 = vdwg.mxu0
        %v907 = vadd.f32 %v829, %v901
        %v908 = vadd.f32 %v830, %v903
        %909 = vrot.lane.b32.xlu0 %v305, 111
        %v910 = vpop.permute.xlu0 %909
        %911 = vrot.lane.b32.xlu0 %v306, 111
        %v912 = vpop.permute.xlu0 %911
        %vm913 = vcmp.lt.s32.totalorder %v314, 111
        %v914 = vsel %vm913, %v910, %v912
        %v915 = vsel %vm913, %v912, %v910
        %s916 = scalar_lea.vmem %s1, 16
        %v917 = vld [vmem:[%s916] ss:$8 sm:$0x3]
        %v919 = vlaneseq
        %v920 = vshrl.u32 %v919, 7
        %v921 = vsub.s32 0, %v920
        %v922 = vrot.slane %v917, %v921
        %v923 = vlaneseq
        %v924 = vshrl.u32 %v923, 7
        %v925 = vsub.s32 1, %v924
        %v926 = vrot.slane %v917, %v925
        %v929 = vmul.f32 %v914, %v922
        %v930 = vmul.f32 %v915, %v926
        %s931 = scalar_lea.vmem %s2, 32
        %v932 = vld [vmem:[%s931] sm:$0xf]
        %v933 = vpack.c.bf16 %v929, %v929
        %v934 = vpack.c.bf16 %v930, %v930
        %v936 = vsel %vm361, %v932, 0
        %v939 = vsel %vm365, %v933, 0
        %v942 = vsel %vm365, %v934, 0
        %944 = vmatprep.subr.bf16.mxu0 %v942
        %945 = vmatpush1.bf16.msra.mxu0 %v939
        %946 = vmatprep.subr.bf16.mxu0 0
        %947 = vmatpush1.bf16.msra.mxu0 0
        %948 = vmatprep.subr.bf16.mxu0 0
        %949 = vmatpush1.bf16.msra.mxu0 0
        %950 = vmatprep.subr.bf16.mxu0 0
        %951 = vmatpush1.bf16.msra.mxu0 0
        %952 = vmatprep.subr.bf16.mxu0 0
        %953 = vmatpush1.bf16.msra.mxu0 0
        %954 = vmatprep.subr.bf16.mxu0 0
        %955 = vmatpush1.bf16.msra.mxu0 0
        %956 = vmatprep.subr.bf16.mxu0 0
        %957 = vmatpush1.bf16.msra.mxu0 0
        %958 = vmatprep.subr.bf16.mxu0 0
        %959 = vmatpush1.bf16.msra.mxu0 0
        %960 = vmatprep.subr.bf16.mxu0 0
        %961 = vmatpush1.bf16.msra.mxu0 0
        %962 = vmatprep.subr.bf16.mxu0 0
        %963 = vmatpush1.bf16.msra.mxu0 0
        %964 = vmatprep.subr.bf16.mxu0 0
        %965 = vmatpush1.bf16.msra.mxu0 0
        %966 = vmatprep.subr.bf16.mxu0 0
        %967 = vmatpush1.bf16.msra.mxu0 0
        %968 = vmatprep.subr.bf16.mxu0 0
        %969 = vmatpush1.bf16.msra.mxu0 0
        %970 = vmatprep.subr.bf16.mxu0 0
        %971 = vmatpush1.bf16.msra.mxu0 0
        %972 = vmatprep.subr.bf16.mxu0 0
        %973 = vmatpush1.bf16.msra.mxu0 0
        %974 = vmatprep.subr.bf16.mxu0 0
        %975 = vmatpush1.bf16.msra.mxu0 0
        %976 = vmatprep.mubr.bf16.mxu0 0
        %977 = vmatmul.mubr.bf16.gmra.mrb[0].mxu0 %v936
        %v978 = vpop.f32.mrb[0].mxu0
        %v979 = vadd.f32 0.0, %v978
        %v980 = vpop.f32.mrb[0].mxu0
        %v981 = vadd.f32 0.0, %v980
        %v982 = vpop.f32.mrb[0].mxu0
        %v983 = vpop.f32.mrb[0].mxu0
        %984 = vdwg.mxu0
        %v985 = vadd.f32 %v907, %v979
        %v986 = vadd.f32 %v908, %v981
        %v987 = vadd.f32 %v985, %v986
        %988 = vadd.xlane.f32.xlu0 %v987
        %v989 = vpop.xlane.xlu0 %988
        %v990 = vmul.f32 %v989, 0.00390625
        %v991 = vmul.f32 %v985, %v985
        %v992 = vmul.f32 %v986, %v986
        %v993 = vadd.f32 %v991, %v992
        %994 = vadd.xlane.f32.xlu0 %v993
        %v995 = vpop.xlane.xlu0 %994
        %v996 = vmul.f32 %v995, 0.00390625
        %v997 = vmul.f32 %v990, %v990
        %v998 = vsub.f32 %v996, %v997
        %v999 = vmax.f32 %v998, 0.0
        %v1000 = vsub.f32 %v985, %v990
        %v1001 = vsub.f32 %v986, %v990
        %v1002 = vadd.f32 %v999, 1e-05
        %v1003 = vrsqrt.pop %v1002
        %v1004 = vmul.f32 %v1000, %v1003
        %v1005 = vmul.f32 %v1001, %v1003
        %1007 = vset.pattern.permute.xlu0 0
        %1008 = vperm.xlu0 %1007, %v307
        %v1009 = vpop.permute.xlu0 %1008
        %v1011 = vmul.f32 %v1004, %v1009
        %v1012 = vmul.f32 %v1005, %v1009
        %1014 = vset.pattern.permute.xlu0 0
        %1015 = vperm.xlu0 %1014, %v308
        %v1016 = vpop.permute.xlu0 %1015
        %v1018 = vadd.f32 %v1011, %v1016
        %v1019 = vadd.f32 %v1012, %v1016
        %v1020 = vmax.f32 %v1018, 0.0
        %v1021 = vmax.f32 %v1019, 0.0
        %v1022 = vld [vmem:[%s6] sm:$0xff]
        %v1023 = vld [vmem:[%s7] sm:$0xff]
        %1024 = vrot.lane.b32.xlu0 %v1020, 17
        %v1025 = vpop.permute.xlu0 %1024
        %1026 = vrot.lane.b32.xlu0 %v1021, 17
        %v1027 = vpop.permute.xlu0 %1026
        %v1028 = vsel %vm315, %v1025, %v1027
        %v1029 = vsel %vm315, %v1027, %v1025
        %v1030 = vmul.f32 %v1029, %v323
        %v1031 = vmul.f32 %v1028, %v327
        %v1032 = vld [vmem:[%s5] sm:$0xf]
        %v1033 = vpack.c.bf16 %v1030, %v1030
        %v1034 = vpack.c.bf16 %v1031, %v1031
        %1035 = vrot.lane.b32.xlu0 %v1020, 16
        %v1036 = vpop.permute.xlu0 %1035
        %1037 = vrot.lane.b32.xlu0 %v1021, 16
        %v1038 = vpop.permute.xlu0 %1037
        %v1039 = vsel %vm339, %v1036, %v1038
        %v1040 = vsel %vm339, %v1038, %v1036
        %v1041 = vmul.f32 %v1040, %v348
        %v1042 = vmul.f32 %v1039, %v352
        %s1043 = scalar_lea.vmem %s5, 4
        %v1044 = vld [vmem:[%s1043] sm:$0xf]
        %v1045 = vpack.c.bf16 %v1041, %v1041
        %v1046 = vpack.c.bf16 %v1042, %v1042
        %v1048 = vsel %vm361, %v1044, 0
        %v1051 = vsel %vm365, %v1045, 0
        %v1054 = vsel %vm365, %v1046, 0
        %1056 = vmatprep.subr.bf16.mxu0 %v1054
        %1057 = vmatpush1.bf16.msra.mxu0 %v1051
        %1058 = vmatprep.subr.bf16.mxu0 0
        %1059 = vmatpush1.bf16.msra.mxu0 0
        %1060 = vmatprep.subr.bf16.mxu0 0
        %1061 = vmatpush1.bf16.msra.mxu0 0
        %1062 = vmatprep.subr.bf16.mxu0 0
        %1063 = vmatpush1.bf16.msra.mxu0 0
        %1064 = vmatprep.subr.bf16.mxu0 0
        %1065 = vmatpush1.bf16.msra.mxu0 0
        %1066 = vmatprep.subr.bf16.mxu0 0
        %1067 = vmatpush1.bf16.msra.mxu0 0
        %1068 = vmatprep.subr.bf16.mxu0 0
        %1069 = vmatpush1.bf16.msra.mxu0 0
        %1070 = vmatprep.subr.bf16.mxu0 0
        %1071 = vmatpush1.bf16.msra.mxu0 0
        %1072 = vmatprep.subr.bf16.mxu0 0
        %1073 = vmatpush1.bf16.msra.mxu0 0
        %1074 = vmatprep.subr.bf16.mxu0 0
        %1075 = vmatpush1.bf16.msra.mxu0 0
        %1076 = vmatprep.subr.bf16.mxu0 0
        %1077 = vmatpush1.bf16.msra.mxu0 0
        %1078 = vmatprep.subr.bf16.mxu0 0
        %1079 = vmatpush1.bf16.msra.mxu0 0
        %1080 = vmatprep.subr.bf16.mxu0 0
        %1081 = vmatpush1.bf16.msra.mxu0 0
        %1082 = vmatprep.subr.bf16.mxu0 0
        %1083 = vmatpush1.bf16.msra.mxu0 0
        %1084 = vmatprep.subr.bf16.mxu0 0
        %1085 = vmatpush1.bf16.msra.mxu0 0
        %1086 = vmatprep.subr.bf16.mxu0 0
        %1087 = vmatpush1.bf16.msra.mxu0 0
        %1088 = vmatprep.mubr.bf16.mxu0 0
        %1089 = vmatmul.mubr.bf16.gmra.mrb[0].mxu0 %v1048
        %v1090 = vpop.f32.mrb[0].mxu0
        %v1091 = vadd.f32 0.0, %v1090
        %v1092 = vpop.f32.mrb[0].mxu0
        %v1093 = vadd.f32 0.0, %v1092
        %v1094 = vpop.f32.mrb[0].mxu0
        %v1095 = vpop.f32.mrb[0].mxu0
        %1096 = vdwg.mxu0
        %v1098 = vsel %vm361, %v1032, 0
        %v1101 = vsel %vm365, %v1033, 0
        %v1104 = vsel %vm365, %v1034, 0
        %1106 = vmatprep.subr.bf16.mxu0 %v1104
        %1107 = vmatpush1.bf16.msra.mxu0 %v1101
        %1108 = vmatprep.subr.bf16.mxu0 0
        %1109 = vmatpush1.bf16.msra.mxu0 0
        %1110 = vmatprep.subr.bf16.mxu0 0
        %1111 = vmatpush1.bf16.msra.mxu0 0
        %1112 = vmatprep.subr.bf16.mxu0 0
        %1113 = vmatpush1.bf16.msra.mxu0 0
        %1114 = vmatprep.subr.bf16.mxu0 0
        %1115 = vmatpush1.bf16.msra.mxu0 0
        %1116 = vmatprep.subr.bf16.mxu0 0
        %1117 = vmatpush1.bf16.msra.mxu0 0
        %1118 = vmatprep.subr.bf16.mxu0 0
        %1119 = vmatpush1.bf16.msra.mxu0 0
        %1120 = vmatprep.subr.bf16.mxu0 0
        %1121 = vmatpush1.bf16.msra.mxu0 0
        %1122 = vmatprep.subr.bf16.mxu0 0
        %1123 = vmatpush1.bf16.msra.mxu0 0
        %1124 = vmatprep.subr.bf16.mxu0 0
        %1125 = vmatpush1.bf16.msra.mxu0 0
        %1126 = vmatprep.subr.bf16.mxu0 0
        %1127 = vmatpush1.bf16.msra.mxu0 0
        %1128 = vmatprep.subr.bf16.mxu0 0
        %1129 = vmatpush1.bf16.msra.mxu0 0
        %1130 = vmatprep.subr.bf16.mxu0 0
        %1131 = vmatpush1.bf16.msra.mxu0 0
        %1132 = vmatprep.subr.bf16.mxu0 0
        %1133 = vmatpush1.bf16.msra.mxu0 0
        %1134 = vmatprep.subr.bf16.mxu0 0
        %1135 = vmatpush1.bf16.msra.mxu0 0
        %1136 = vmatprep.subr.bf16.mxu0 0
        %1137 = vmatpush1.bf16.msra.mxu0 0
        %1138 = vmatprep.mubr.bf16.mxu0 0
        %1139 = vmatmul.mubr.bf16.gmra.mrb[0].mxu0 %v1098
        %v1140 = vpop.f32.mrb[0].mxu0
        %v1141 = vadd.f32 %v1091, %v1140
        %v1142 = vpop.f32.mrb[0].mxu0
        %v1143 = vadd.f32 %v1093, %v1142
        %v1144 = vpop.f32.mrb[0].mxu0
        %v1145 = vpop.f32.mrb[0].mxu0
        %1146 = vdwg.mxu0
        %1147 = vrot.lane.b32.xlu0 %v1020, 15
        %v1148 = vpop.permute.xlu0 %1147
        %1149 = vrot.lane.b32.xlu0 %v1021, 15
        %v1150 = vpop.permute.xlu0 %1149
        %v1151 = vsel %vm467, %v1148, %v1150
        %v1152 = vsel %vm467, %v1150, %v1148
        %v1153 = vmul.f32 %v1152, %v476
        %v1154 = vmul.f32 %v1151, %v480
        %s1155 = scalar_lea.vmem %s5, 8
        %v1156 = vld [vmem:[%s1155] sm:$0xf]
        %v1157 = vpack.c.bf16 %v1153, %v1153
        %v1158 = vpack.c.bf16 %v1154, %v1154
        %v1160 = vsel %vm361, %v1156, 0
        %v1163 = vsel %vm365, %v1157, 0
        %v1166 = vsel %vm365, %v1158, 0
        %1168 = vmatprep.subr.bf16.mxu0 %v1166
        %1169 = vmatpush1.bf16.msra.mxu0 %v1163
        %1170 = vmatprep.subr.bf16.mxu0 0
        %1171 = vmatpush1.bf16.msra.mxu0 0
        %1172 = vmatprep.subr.bf16.mxu0 0
        %1173 = vmatpush1.bf16.msra.mxu0 0
        %1174 = vmatprep.subr.bf16.mxu0 0
        %1175 = vmatpush1.bf16.msra.mxu0 0
        %1176 = vmatprep.subr.bf16.mxu0 0
        %1177 = vmatpush1.bf16.msra.mxu0 0
        %1178 = vmatprep.subr.bf16.mxu0 0
        %1179 = vmatpush1.bf16.msra.mxu0 0
        %1180 = vmatprep.subr.bf16.mxu0 0
        %1181 = vmatpush1.bf16.msra.mxu0 0
        %1182 = vmatprep.subr.bf16.mxu0 0
        %1183 = vmatpush1.bf16.msra.mxu0 0
        %1184 = vmatprep.subr.bf16.mxu0 0
        %1185 = vmatpush1.bf16.msra.mxu0 0
        %1186 = vmatprep.subr.bf16.mxu0 0
        %1187 = vmatpush1.bf16.msra.mxu0 0
        %1188 = vmatprep.subr.bf16.mxu0 0
        %1189 = vmatpush1.bf16.msra.mxu0 0
        %1190 = vmatprep.subr.bf16.mxu0 0
        %1191 = vmatpush1.bf16.msra.mxu0 0
        %1192 = vmatprep.subr.bf16.mxu0 0
        %1193 = vmatpush1.bf16.msra.mxu0 0
        %1194 = vmatprep.subr.bf16.mxu0 0
        %1195 = vmatpush1.bf16.msra.mxu0 0
        %1196 = vmatprep.subr.bf16.mxu0 0
        %1197 = vmatpush1.bf16.msra.mxu0 0
        %1198 = vmatprep.subr.bf16.mxu0 0
        %1199 = vmatpush1.bf16.msra.mxu0 0
        %1200 = vmatprep.mubr.bf16.mxu0 0
        %1201 = vmatmul.mubr.bf16.gmra.mrb[0].mxu0 %v1160
        %v1202 = vpop.f32.mrb[0].mxu0
        %v1203 = vadd.f32 0.0, %v1202
        %v1204 = vpop.f32.mrb[0].mxu0
        %v1205 = vadd.f32 0.0, %v1204
        %v1206 = vpop.f32.mrb[0].mxu0
        %v1207 = vpop.f32.mrb[0].mxu0
        %1208 = vdwg.mxu0
        %v1209 = vadd.f32 %v1141, %v1203
        %v1210 = vadd.f32 %v1143, %v1205
        %1211 = vrot.lane.b32.xlu0 %v1020, 1
        %v1212 = vpop.permute.xlu0 %1211
        %1213 = vrot.lane.b32.xlu0 %v1021, 1
        %v1214 = vpop.permute.xlu0 %1213
        %v1215 = vsel %vm545, %v1212, %v1214
        %v1216 = vsel %vm545, %v1214, %v1212
        %v1217 = vmul.f32 %v1216, %v554
        %v1218 = vmul.f32 %v1215, %v558
        %s1219 = scalar_lea.vmem %s5, 12
        %v1220 = vld [vmem:[%s1219] sm:$0xf]
        %v1221 = vpack.c.bf16 %v1217, %v1217
        %v1222 = vpack.c.bf16 %v1218, %v1218
        %v1224 = vsel %vm361, %v1220, 0
        %v1227 = vsel %vm365, %v1221, 0
        %v1230 = vsel %vm365, %v1222, 0
        %1232 = vmatprep.subr.bf16.mxu0 %v1230
        %1233 = vmatpush1.bf16.msra.mxu0 %v1227
        %1234 = vmatprep.subr.bf16.mxu0 0
        %1235 = vmatpush1.bf16.msra.mxu0 0
        %1236 = vmatprep.subr.bf16.mxu0 0
        %1237 = vmatpush1.bf16.msra.mxu0 0
        %1238 = vmatprep.subr.bf16.mxu0 0
        %1239 = vmatpush1.bf16.msra.mxu0 0
        %1240 = vmatprep.subr.bf16.mxu0 0
        %1241 = vmatpush1.bf16.msra.mxu0 0
        %1242 = vmatprep.subr.bf16.mxu0 0
        %1243 = vmatpush1.bf16.msra.mxu0 0
        %1244 = vmatprep.subr.bf16.mxu0 0
        %1245 = vmatpush1.bf16.msra.mxu0 0
        %1246 = vmatprep.subr.bf16.mxu0 0
        %1247 = vmatpush1.bf16.msra.mxu0 0
        %1248 = vmatprep.subr.bf16.mxu0 0
        %1249 = vmatpush1.bf16.msra.mxu0 0
        %1250 = vmatprep.subr.bf16.mxu0 0
        %1251 = vmatpush1.bf16.msra.mxu0 0
        %1252 = vmatprep.subr.bf16.mxu0 0
        %1253 = vmatpush1.bf16.msra.mxu0 0
        %1254 = vmatprep.subr.bf16.mxu0 0
        %1255 = vmatpush1.bf16.msra.mxu0 0
        %1256 = vmatprep.subr.bf16.mxu0 0
        %1257 = vmatpush1.bf16.msra.mxu0 0
        %1258 = vmatprep.subr.bf16.mxu0 0
        %1259 = vmatpush1.bf16.msra.mxu0 0
        %1260 = vmatprep.subr.bf16.mxu0 0
        %1261 = vmatpush1.bf16.msra.mxu0 0
        %1262 = vmatprep.subr.bf16.mxu0 0
        %1263 = vmatpush1.bf16.msra.mxu0 0
        %1264 = vmatprep.mubr.bf16.mxu0 0
        %1265 = vmatmul.mubr.bf16.gmra.mrb[0].mxu0 %v1224
        %v1266 = vpop.f32.mrb[0].mxu0
        %v1267 = vadd.f32 0.0, %v1266
        %v1268 = vpop.f32.mrb[0].mxu0
        %v1269 = vadd.f32 0.0, %v1268
        %v1270 = vpop.f32.mrb[0].mxu0
        %v1271 = vpop.f32.mrb[0].mxu0
        %1272 = vdwg.mxu0
        %v1273 = vadd.f32 %v1209, %v1267
        %v1274 = vadd.f32 %v1210, %v1269
        %s1275 = scalar_lea.vmem %s5, 16
        %v1276 = vld [vmem:[%s1275] sm:$0xf]
        %v1277 = vpack.c.bf16 %v1020, %v1020
        %v1278 = vpack.c.bf16 %v1021, %v1021
        %v1280 = vsel %vm361, %v1276, 0
        %v1283 = vsel %vm365, %v1277, 0
        %v1286 = vsel %vm365, %v1278, 0
        %1288 = vmatprep.subr.bf16.mxu0 %v1286
        %1289 = vmatpush1.bf16.msra.mxu0 %v1283
        %1290 = vmatprep.subr.bf16.mxu0 0
        %1291 = vmatpush1.bf16.msra.mxu0 0
        %1292 = vmatprep.subr.bf16.mxu0 0
        %1293 = vmatpush1.bf16.msra.mxu0 0
        %1294 = vmatprep.subr.bf16.mxu0 0
        %1295 = vmatpush1.bf16.msra.mxu0 0
        %1296 = vmatprep.subr.bf16.mxu0 0
        %1297 = vmatpush1.bf16.msra.mxu0 0
        %1298 = vmatprep.subr.bf16.mxu0 0
        %1299 = vmatpush1.bf16.msra.mxu0 0
        %1300 = vmatprep.subr.bf16.mxu0 0
        %1301 = vmatpush1.bf16.msra.mxu0 0
        %1302 = vmatprep.subr.bf16.mxu0 0
        %1303 = vmatpush1.bf16.msra.mxu0 0
        %1304 = vmatprep.subr.bf16.mxu0 0
        %1305 = vmatpush1.bf16.msra.mxu0 0
        %1306 = vmatprep.subr.bf16.mxu0 0
        %1307 = vmatpush1.bf16.msra.mxu0 0
        %1308 = vmatprep.subr.bf16.mxu0 0
        %1309 = vmatpush1.bf16.msra.mxu0 0
        %1310 = vmatprep.subr.bf16.mxu0 0
        %1311 = vmatpush1.bf16.msra.mxu0 0
        %1312 = vmatprep.subr.bf16.mxu0 0
        %1313 = vmatpush1.bf16.msra.mxu0 0
        %1314 = vmatprep.subr.bf16.mxu0 0
        %1315 = vmatpush1.bf16.msra.mxu0 0
        %1316 = vmatprep.subr.bf16.mxu0 0
        %1317 = vmatpush1.bf16.msra.mxu0 0
        %1318 = vmatprep.subr.bf16.mxu0 0
        %1319 = vmatpush1.bf16.msra.mxu0 0
        %1320 = vmatprep.mubr.bf16.mxu0 0
        %1321 = vmatmul.mubr.bf16.gmra.mrb[0].mxu0 %v1280
        %v1322 = vpop.f32.mrb[0].mxu0
        %v1323 = vadd.f32 0.0, %v1322
        %v1324 = vpop.f32.mrb[0].mxu0
        %v1325 = vadd.f32 0.0, %v1324
        %v1326 = vpop.f32.mrb[0].mxu0
        %v1327 = vpop.f32.mrb[0].mxu0
        %1328 = vdwg.mxu0
        %v1329 = vadd.f32 %v1273, %v1323
        %v1330 = vadd.f32 %v1274, %v1325
        %1331 = vrot.lane.b32.xlu0 %v1020, 127
        %v1332 = vpop.permute.xlu0 %1331
        %1333 = vrot.lane.b32.xlu0 %v1021, 127
        %v1334 = vpop.permute.xlu0 %1333
        %v1335 = vsel %vm679, %v1332, %v1334
        %v1336 = vsel %vm679, %v1334, %v1332
        %v1337 = vmul.f32 %v1335, %v688
        %v1338 = vmul.f32 %v1336, %v692
        %s1339 = scalar_lea.vmem %s5, 20
        %v1340 = vld [vmem:[%s1339] sm:$0xf]
        %v1341 = vpack.c.bf16 %v1337, %v1337
        %v1342 = vpack.c.bf16 %v1338, %v1338
        %v1344 = vsel %vm361, %v1340, 0
        %v1347 = vsel %vm365, %v1341, 0
        %v1350 = vsel %vm365, %v1342, 0
        %1352 = vmatprep.subr.bf16.mxu0 %v1350
        %1353 = vmatpush1.bf16.msra.mxu0 %v1347
        %1354 = vmatprep.subr.bf16.mxu0 0
        %1355 = vmatpush1.bf16.msra.mxu0 0
        %1356 = vmatprep.subr.bf16.mxu0 0
        %1357 = vmatpush1.bf16.msra.mxu0 0
        %1358 = vmatprep.subr.bf16.mxu0 0
        %1359 = vmatpush1.bf16.msra.mxu0 0
        %1360 = vmatprep.subr.bf16.mxu0 0
        %1361 = vmatpush1.bf16.msra.mxu0 0
        %1362 = vmatprep.subr.bf16.mxu0 0
        %1363 = vmatpush1.bf16.msra.mxu0 0
        %1364 = vmatprep.subr.bf16.mxu0 0
        %1365 = vmatpush1.bf16.msra.mxu0 0
        %1366 = vmatprep.subr.bf16.mxu0 0
        %1367 = vmatpush1.bf16.msra.mxu0 0
        %1368 = vmatprep.subr.bf16.mxu0 0
        %1369 = vmatpush1.bf16.msra.mxu0 0
        %1370 = vmatprep.subr.bf16.mxu0 0
        %1371 = vmatpush1.bf16.msra.mxu0 0
        %1372 = vmatprep.subr.bf16.mxu0 0
        %1373 = vmatpush1.bf16.msra.mxu0 0
        %1374 = vmatprep.subr.bf16.mxu0 0
        %1375 = vmatpush1.bf16.msra.mxu0 0
        %1376 = vmatprep.subr.bf16.mxu0 0
        %1377 = vmatpush1.bf16.msra.mxu0 0
        %1378 = vmatprep.subr.bf16.mxu0 0
        %1379 = vmatpush1.bf16.msra.mxu0 0
        %1380 = vmatprep.subr.bf16.mxu0 0
        %1381 = vmatpush1.bf16.msra.mxu0 0
        %1382 = vmatprep.subr.bf16.mxu0 0
        %1383 = vmatpush1.bf16.msra.mxu0 0
        %1384 = vmatprep.mubr.bf16.mxu0 0
        %1385 = vmatmul.mubr.bf16.gmra.mrb[0].mxu0 %v1344
        %v1386 = vpop.f32.mrb[0].mxu0
        %v1387 = vadd.f32 0.0, %v1386
        %v1388 = vpop.f32.mrb[0].mxu0
        %v1389 = vadd.f32 0.0, %v1388
        %v1390 = vpop.f32.mrb[0].mxu0
        %v1391 = vpop.f32.mrb[0].mxu0
        %1392 = vdwg.mxu0
        %v1393 = vadd.f32 %v1329, %v1387
        %v1394 = vadd.f32 %v1330, %v1389
        %1395 = vrot.lane.b32.xlu0 %v1020, 113
        %v1396 = vpop.permute.xlu0 %1395
        %1397 = vrot.lane.b32.xlu0 %v1021, 113
        %v1398 = vpop.permute.xlu0 %1397
        %v1399 = vsel %vm757, %v1396, %v1398
        %v1400 = vsel %vm757, %v1398, %v1396
        %v1401 = vmul.f32 %v1399, %v766
        %v1402 = vmul.f32 %v1400, %v770
        %s1403 = scalar_lea.vmem %s5, 24
        %v1404 = vld [vmem:[%s1403] sm:$0xf]
        %v1405 = vpack.c.bf16 %v1401, %v1401
        %v1406 = vpack.c.bf16 %v1402, %v1402
        %v1408 = vsel %vm361, %v1404, 0
        %v1411 = vsel %vm365, %v1405, 0
        %v1414 = vsel %vm365, %v1406, 0
        %1416 = vmatprep.subr.bf16.mxu0 %v1414
        %1417 = vmatpush1.bf16.msra.mxu0 %v1411
        %1418 = vmatprep.subr.bf16.mxu0 0
        %1419 = vmatpush1.bf16.msra.mxu0 0
        %1420 = vmatprep.subr.bf16.mxu0 0
        %1421 = vmatpush1.bf16.msra.mxu0 0
        %1422 = vmatprep.subr.bf16.mxu0 0
        %1423 = vmatpush1.bf16.msra.mxu0 0
        %1424 = vmatprep.subr.bf16.mxu0 0
        %1425 = vmatpush1.bf16.msra.mxu0 0
        %1426 = vmatprep.subr.bf16.mxu0 0
        %1427 = vmatpush1.bf16.msra.mxu0 0
        %1428 = vmatprep.subr.bf16.mxu0 0
        %1429 = vmatpush1.bf16.msra.mxu0 0
        %1430 = vmatprep.subr.bf16.mxu0 0
        %1431 = vmatpush1.bf16.msra.mxu0 0
        %1432 = vmatprep.subr.bf16.mxu0 0
        %1433 = vmatpush1.bf16.msra.mxu0 0
        %1434 = vmatprep.subr.bf16.mxu0 0
        %1435 = vmatpush1.bf16.msra.mxu0 0
        %1436 = vmatprep.subr.bf16.mxu0 0
        %1437 = vmatpush1.bf16.msra.mxu0 0
        %1438 = vmatprep.subr.bf16.mxu0 0
        %1439 = vmatpush1.bf16.msra.mxu0 0
        %1440 = vmatprep.subr.bf16.mxu0 0
        %1441 = vmatpush1.bf16.msra.mxu0 0
        %1442 = vmatprep.subr.bf16.mxu0 0
        %1443 = vmatpush1.bf16.msra.mxu0 0
        %1444 = vmatprep.subr.bf16.mxu0 0
        %1445 = vmatpush1.bf16.msra.mxu0 0
        %1446 = vmatprep.subr.bf16.mxu0 0
        %1447 = vmatpush1.bf16.msra.mxu0 0
        %1448 = vmatprep.mubr.bf16.mxu0 0
        %1449 = vmatmul.mubr.bf16.gmra.mrb[0].mxu0 %v1408
        %v1450 = vpop.f32.mrb[0].mxu0
        %v1451 = vadd.f32 0.0, %v1450
        %v1452 = vpop.f32.mrb[0].mxu0
        %v1453 = vadd.f32 0.0, %v1452
        %v1454 = vpop.f32.mrb[0].mxu0
        %v1455 = vpop.f32.mrb[0].mxu0
        %1456 = vdwg.mxu0
        %v1457 = vadd.f32 %v1393, %v1451
        %v1458 = vadd.f32 %v1394, %v1453
        %1459 = vrot.lane.b32.xlu0 %v1020, 112
        %v1460 = vpop.permute.xlu0 %1459
        %1461 = vrot.lane.b32.xlu0 %v1021, 112
        %v1462 = vpop.permute.xlu0 %1461
        %v1463 = vsel %vm835, %v1460, %v1462
        %v1464 = vsel %vm835, %v1462, %v1460
        %v1465 = vmul.f32 %v1463, %v844
        %v1466 = vmul.f32 %v1464, %v848
        %s1467 = scalar_lea.vmem %s5, 28
        %v1468 = vld [vmem:[%s1467] sm:$0xf]
        %v1469 = vpack.c.bf16 %v1465, %v1465
        %v1470 = vpack.c.bf16 %v1466, %v1466
        %v1472 = vsel %vm361, %v1468, 0
        %v1475 = vsel %vm365, %v1469, 0
        %v1478 = vsel %vm365, %v1470, 0
        %1480 = vmatprep.subr.bf16.mxu0 %v1478
        %1481 = vmatpush1.bf16.msra.mxu0 %v1475
        %1482 = vmatprep.subr.bf16.mxu0 0
        %1483 = vmatpush1.bf16.msra.mxu0 0
        %1484 = vmatprep.subr.bf16.mxu0 0
        %1485 = vmatpush1.bf16.msra.mxu0 0
        %1486 = vmatprep.subr.bf16.mxu0 0
        %1487 = vmatpush1.bf16.msra.mxu0 0
        %1488 = vmatprep.subr.bf16.mxu0 0
        %1489 = vmatpush1.bf16.msra.mxu0 0
        %1490 = vmatprep.subr.bf16.mxu0 0
        %1491 = vmatpush1.bf16.msra.mxu0 0
        %1492 = vmatprep.subr.bf16.mxu0 0
        %1493 = vmatpush1.bf16.msra.mxu0 0
        %1494 = vmatprep.subr.bf16.mxu0 0
        %1495 = vmatpush1.bf16.msra.mxu0 0
        %1496 = vmatprep.subr.bf16.mxu0 0
        %1497 = vmatpush1.bf16.msra.mxu0 0
        %1498 = vmatprep.subr.bf16.mxu0 0
        %1499 = vmatpush1.bf16.msra.mxu0 0
        %1500 = vmatprep.subr.bf16.mxu0 0
        %1501 = vmatpush1.bf16.msra.mxu0 0
        %1502 = vmatprep.subr.bf16.mxu0 0
        %1503 = vmatpush1.bf16.msra.mxu0 0
        %1504 = vmatprep.subr.bf16.mxu0 0
        %1505 = vmatpush1.bf16.msra.mxu0 0
        %1506 = vmatprep.subr.bf16.mxu0 0
        %1507 = vmatpush1.bf16.msra.mxu0 0
        %1508 = vmatprep.subr.bf16.mxu0 0
        %1509 = vmatpush1.bf16.msra.mxu0 0
        %1510 = vmatprep.subr.bf16.mxu0 0
        %1511 = vmatpush1.bf16.msra.mxu0 0
        %1512 = vmatprep.mubr.bf16.mxu0 0
        %1513 = vmatmul.mubr.bf16.gmra.mrb[0].mxu0 %v1472
        %v1514 = vpop.f32.mrb[0].mxu0
        %v1515 = vadd.f32 0.0, %v1514
        %v1516 = vpop.f32.mrb[0].mxu0
        %v1517 = vadd.f32 0.0, %v1516
        %v1518 = vpop.f32.mrb[0].mxu0
        %v1519 = vpop.f32.mrb[0].mxu0
        %1520 = vdwg.mxu0
        %v1521 = vadd.f32 %v1457, %v1515
        %v1522 = vadd.f32 %v1458, %v1517
        %1523 = vrot.lane.b32.xlu0 %v1020, 111
        %v1524 = vpop.permute.xlu0 %1523
        %1525 = vrot.lane.b32.xlu0 %v1021, 111
        %v1526 = vpop.permute.xlu0 %1525
        %v1527 = vsel %vm913, %v1524, %v1526
        %v1528 = vsel %vm913, %v1526, %v1524
        %v1529 = vmul.f32 %v1527, %v922
        %v1530 = vmul.f32 %v1528, %v926
        %s1531 = scalar_lea.vmem %s5, 32
        %v1532 = vld [vmem:[%s1531] sm:$0xf]
        %v1533 = vpack.c.bf16 %v1529, %v1529
        %v1534 = vpack.c.bf16 %v1530, %v1530
        %v1536 = vsel %vm361, %v1532, 0
        %v1539 = vsel %vm365, %v1533, 0
        %v1542 = vsel %vm365, %v1534, 0
        %1544 = vmatprep.subr.bf16.mxu0 %v1542
        %1545 = vmatpush1.bf16.msra.mxu0 %v1539
        %1546 = vmatprep.subr.bf16.mxu0 0
        %1547 = vmatpush1.bf16.msra.mxu0 0
        %1548 = vmatprep.subr.bf16.mxu0 0
        %1549 = vmatpush1.bf16.msra.mxu0 0
        %1550 = vmatprep.subr.bf16.mxu0 0
        %1551 = vmatpush1.bf16.msra.mxu0 0
        %1552 = vmatprep.subr.bf16.mxu0 0
        %1553 = vmatpush1.bf16.msra.mxu0 0
        %1554 = vmatprep.subr.bf16.mxu0 0
        %1555 = vmatpush1.bf16.msra.mxu0 0
        %1556 = vmatprep.subr.bf16.mxu0 0
        %1557 = vmatpush1.bf16.msra.mxu0 0
        %1558 = vmatprep.subr.bf16.mxu0 0
        %1559 = vmatpush1.bf16.msra.mxu0 0
        %1560 = vmatprep.subr.bf16.mxu0 0
        %1561 = vmatpush1.bf16.msra.mxu0 0
        %1562 = vmatprep.subr.bf16.mxu0 0
        %1563 = vmatpush1.bf16.msra.mxu0 0
        %1564 = vmatprep.subr.bf16.mxu0 0
        %1565 = vmatpush1.bf16.msra.mxu0 0
        %1566 = vmatprep.subr.bf16.mxu0 0
        %1567 = vmatpush1.bf16.msra.mxu0 0
        %1568 = vmatprep.subr.bf16.mxu0 0
        %1569 = vmatpush1.bf16.msra.mxu0 0
        %1570 = vmatprep.subr.bf16.mxu0 0
        %1571 = vmatpush1.bf16.msra.mxu0 0
        %1572 = vmatprep.subr.bf16.mxu0 0
        %1573 = vmatpush1.bf16.msra.mxu0 0
        %1574 = vmatprep.subr.bf16.mxu0 0
        %1575 = vmatpush1.bf16.msra.mxu0 0
        %1576 = vmatprep.mubr.bf16.mxu0 0
        %1577 = vmatmul.mubr.bf16.gmra.mrb[0].mxu0 %v1536
        %v1578 = vpop.f32.mrb[0].mxu0
        %v1579 = vadd.f32 0.0, %v1578
        %v1580 = vpop.f32.mrb[0].mxu0
        %v1581 = vadd.f32 0.0, %v1580
        %v1582 = vpop.f32.mrb[0].mxu0
        %v1583 = vpop.f32.mrb[0].mxu0
        %1584 = vdwg.mxu0
        %v1585 = vadd.f32 %v1521, %v1579
        %v1586 = vadd.f32 %v1522, %v1581
        %v1587 = vadd.f32 %v1585, %v1586
        %1588 = vadd.xlane.f32.xlu0 %v1587
        %v1589 = vpop.xlane.xlu0 %1588
        %v1590 = vmul.f32 %v1589, 0.00390625
        %v1591 = vmul.f32 %v1585, %v1585
        %v1592 = vmul.f32 %v1586, %v1586
        %v1593 = vadd.f32 %v1591, %v1592
        %1594 = vadd.xlane.f32.xlu0 %v1593
        %v1595 = vpop.xlane.xlu0 %1594
        %v1596 = vmul.f32 %v1595, 0.00390625
        %v1597 = vmul.f32 %v1590, %v1590
        %v1598 = vsub.f32 %v1596, %v1597
        %v1599 = vmax.f32 %v1598, 0.0
        %v1600 = vsub.f32 %v1585, %v1590
        %v1601 = vsub.f32 %v1586, %v1590
        %v1602 = vadd.f32 %v1599, 1e-05
        %v1603 = vrsqrt.pop %v1602
        %v1604 = vmul.f32 %v1600, %v1603
        %v1605 = vmul.f32 %v1601, %v1603
        %1607 = vset.pattern.permute.xlu0 0
        %1608 = vperm.xlu0 %1607, %v1022
        %v1609 = vpop.permute.xlu0 %1608
        %v1611 = vmul.f32 %v1604, %v1609
        %v1612 = vmul.f32 %v1605, %v1609
        %1614 = vset.pattern.permute.xlu0 0
        %1615 = vperm.xlu0 %1614, %v1023
        %v1616 = vpop.permute.xlu0 %1615
        %v1618 = vadd.f32 %v1611, %v1616
        %v1619 = vadd.f32 %v1612, %v1616
        %v1620 = vmax.f32 %v1618, 0.0
        %v1621 = vmax.f32 %v1619, 0.0
        %1622 = vst [vmem:[%s298] sm:$0xff] %v1620
        %1623 = vst [vmem:[%s298 + $0x8] sm:$0xff] %v1621
        %s1624 = sand.u32 %s203, 1
        %s1625 = scalar_lea.sflag [#allocation3], %s1624
        %s1626 = sand.u32 %s203, 1
        %s1627 = smul.addr %s1626, 16
        %s1628 = scalar_lea.vmem [#allocation2], %s1627
        // Predicated region
        $region53: #{tpu_custom_call.1} parent=51 // pred_check
          %p1629 = pneg %p213
        $region54: #{tpu_custom_call.1} parent=51 // pred_check_branch
          %1631 = sbr.rel (%p1629) target = $region56
        $region55: #{tpu_custom_call.1} parent=51 // pred_region
          %s1633 = ssub.s32 256, 256
          %1634 = vsyncadd %s1625, %s1633
          %s1635 = smul.addr %s22, 2
          %s1636 = smul.addr %s1635, 128
          %s1637 = scalar_lea.hbm %s8, %s1636
          %s1639 = sshll.u32 %s1628, 4
          %s1640 = int_to_ptr.vmem [resolvable:$true] %s1639
          %1642 = dma.vmem_to_hbm [thread:$0]  %s1640, 256, %s1637, %s1625
        $region56: #{tpu_custom_call.1} parent=51 // pred_fallthru
          _
      $region52: #{tpu_custom_call.1} parent=5 // pred_fallthru
        _
      %p1643 = scmp.le.s32.totalorder 2, %s17
      // Predicated region
      $region57: #{tpu_custom_call.1} parent=5 // pred_check
        %p1644 = pneg %p1643
      $region58: #{tpu_custom_call.1} parent=5 // pred_check_branch
        %1646 = sbr.rel (%p1644) target = $region60
      $region59: #{tpu_custom_call.1} parent=5 // pred_region
        %s1647 = ssub.s32 %s17, 2
        // Predicated region
        $region61: #{tpu_custom_call.1} parent=59 // pred_check
          %p1648 = pneg %p219
        $region62: #{tpu_custom_call.1} parent=59 // pred_check_branch
          %1650 = sbr.rel (%p1648) target = $region64
        $region63: #{tpu_custom_call.1} parent=59 // pred_region
          %s1651 = sand.u32 %s204, 1
          %s1652 = scalar_lea.sflag [#allocation3], %s1651
          %s1653 = sand.u32 %s204, 1
          %s1654 = smul.addr %s1653, 16
          %s1655 = scalar_lea.vmem [#allocation2], %s1654
          %1656 = dma.done %s1652, 256
        $region64: #{tpu_custom_call.1} parent=59 // pred_fallthru
          _
      $region60: #{tpu_custom_call.1} parent=5 // pred_fallthru
        _
    $region6: #{tpu_custom_call.1} parent=1 // loop_footer
      %s21 = sadd.s32 1, %s17
    $region7: #{tpu_custom_call.1} parent=1 // loop_footer_branch
      %16 = sbr.rel target = $region3
    $region8: #{tpu_custom_call.1} parent=1 // loop_exit
      _
    %1657 = vsyncpa [#allocation3], 1
    %s1658 = scalar_lea.sflag [#allocation3], 1
    %1659 = vsyncpa %s1658, 1

</llo_original>
